<compile_context>
chip_gen: v5e
topology: v5e:2x2
jax: 0.10.0
libtpu: 0.0.40
codegen_flags: <defaults>
</compile_context>

<pallas_src>
import math

import jax
import jax.numpy as jnp
from jax.experimental import pallas as pl
from jax.experimental.pallas import tpu as pltpu

# ----------------------------- hyperparameters (small, synthetic) -----------------------------
VOCAB = 50
BATCH = 2
SEQ = 8
HIDDEN = 32            # bert_embed_dim
NUM_HEADS = 4
HEAD_DIM = HIDDEN // NUM_HEADS
FFN = 64               # BERT intermediate size
NUM_LAYERS = 2
FEATURE_DIM = 16       # feature_dim of mlp_embed
LN_EPS = 1e-12         # BERT LayerNorm eps
NORM_EPS = 1e-12       # F.normalize eps
NEG_INF = -1e9

ROWS = BATCH * SEQ
VEC_W = 3 * HIDDEN     # widest per-layer vector (fused QKV bias) -> row width of lvec slab


# ----------------------------- in-kernel math helpers -----------------------------
def _erf(x):
    # Abramowitz & Stegun 7.1.26 (max abs err ~1.5e-7), built from exp only so it lowers
    # on Mosaic.  Matches exact-erf GELU (PyTorch nn.GELU default / HF BERT "gelu").
    a1, a2, a3, a4, a5 = 0.254829592, -0.284496736, 1.421413741, -1.453152027, 1.061405429
    p = 0.3275911
    sgn = jnp.where(x >= 0.0, 1.0, -1.0)
    ax = jnp.abs(x)
    t = 1.0 / (1.0 + p * ax)
    poly = ((((a5 * t + a4) * t + a3) * t + a2) * t + a1) * t
    return sgn * (1.0 - poly * jnp.exp(-ax * ax))


def _gelu(x):
    return 0.5 * x * (1.0 + _erf(x * (2.0 ** -0.5)))


def _layernorm(x, g, b, eps=LN_EPS):
    mu = jnp.mean(x, axis=-1, keepdims=True)
    xc = x - mu
    var = jnp.mean(xc * xc, axis=-1, keepdims=True)
    return xc * jax.lax.rsqrt(var + eps) * g + b


def _bf16(x):
    return x.astype(jnp.bfloat16)


# ----------------------------- the single fused Pallas kernel -----------------------------
def _path_bert_kernel(
    x_ref,        # (ROWS, HIDDEN)          f32   embedding sum (pre-LN)
    bias_ref,     # (ROWS, ROWS)            f32   additive attention bias
    wqkv_ref,     # (L, HIDDEN, 3*HIDDEN)   bf16
    wo_ref,       # (L, HIDDEN, HIDDEN)     bf16
    wff1_ref,     # (L, HIDDEN, FFN)        bf16
    wff2_ref,     # (L, FFN, HIDDEN)        bf16
    lvec_ref,     # (L, 8, VEC_W)           f32   per-layer biases / LN params
    headw_ref,    # (HIDDEN, HIDDEN+2*F)    bf16  [pool_w | mlp_w1 | mlp_w2(padded)]
    gvec_ref,     # (5, HIDDEN)             f32   [emb_g, emb_b, pool_b, m1_b, m2_b]
    o_ref,        # (BATCH, FEATURE_DIM)    f32
):
    scale = 1.0 / math.sqrt(HEAD_DIM)
    bias = bias_ref[...]

    gv = gvec_ref[...]
    emb_g, emb_b = gv[0:1, :], gv[1:2, :]
    pool_b = gv[2:3, :]
    m1_b = gv[3:4, :FEATURE_DIM]
    m2_b = gv[4:5, :FEATURE_DIM]

    # embedding LayerNorm
    x = _layernorm(x_ref[...], emb_g, emb_b)                          # (ROWS, H) f32

    for l in range(NUM_LAYERS):
        lv = lvec_ref[l]                                              # (8, VEC_W) f32
        bqkv = lv[0:1, :]
        bo = lv[1:2, :HIDDEN]
        ln1_g, ln1_b = lv[2:3, :HIDDEN], lv[3:4, :HIDDEN]
        bff1 = lv[4:5, :FFN]
        bff2 = lv[5:6, :HIDDEN]
        ln2_g, ln2_b = lv[6:7, :HIDDEN], lv[7:8, :HIDDEN]

        # ---- self-attention: fused QKV projection, one K transpose per layer ----
        qkv = jnp.dot(_bf16(x), wqkv_ref[l],
                      preferred_element_type=jnp.float32) + bqkv      # (ROWS, 3H) f32
        q_all = qkv[:, :HIDDEN]
        kT = qkv[:, HIDDEN:2 * HIDDEN].T                              # (H, ROWS) — hoisted
        v_all = qkv[:, 2 * HIDDEN:]

        ctx_parts = []
        for h in range(NUM_HEADS):
            lo = h * HEAD_DIM
            hi = lo + HEAD_DIM
            s = jnp.dot(_bf16(q_all[:, lo:hi]), _bf16(kT[lo:hi, :]),
                        preferred_element_type=jnp.float32) * scale + bias
            s = s - jnp.max(s, axis=-1, keepdims=True)
            p = jnp.exp(s)
            p = p * pl.reciprocal(jnp.sum(p, axis=-1, keepdims=True), approx=True)
            ctx_parts.append(jnp.dot(_bf16(p), _bf16(v_all[:, lo:hi]),
                                     preferred_element_type=jnp.float32))   # (ROWS, hd)
        # lane-concat head contexts -> single output projection matmul
        ctx = jnp.concatenate(ctx_parts, axis=-1)                     # (ROWS, H)
        attn = jnp.dot(_bf16(ctx), wo_ref[l], preferred_element_type=jnp.float32)
        x1 = _layernorm(x + attn + bo, ln1_g, ln1_b)

        # ---- feed-forward ----
        ff = _gelu(jnp.dot(_bf16(x1), wff1_ref[l],
                           preferred_element_type=jnp.float32) + bff1)
        ff = jnp.dot(_bf16(ff), wff2_ref[l],
                     preferred_element_type=jnp.float32) + bff2
        x = _layernorm(x1 + ff, ln2_g, ln2_b)

    # ---- select CLS rows, then BERT pooler (dense+tanh) + mlp_embed + normalize ----
    cls = jnp.concatenate([x[b * SEQ:b * SEQ + 1, :] for b in range(BATCH)], axis=0)  # (B, H)

    hw = headw_ref[...]                                               # (H, H+2F) bf16
    pool_w = hw[:, :HIDDEN]
    m1_w = hw[:, HIDDEN:HIDDEN + FEATURE_DIM]
    m2_w = hw[:FEATURE_DIM, HIDDEN + FEATURE_DIM:]

    pooled = jnp.tanh(jnp.dot(_bf16(cls), pool_w,
                              preferred_element_type=jnp.float32) + pool_b)
    e = _gelu(jnp.dot(_bf16(pooled), m1_w,
                      preferred_element_type=jnp.float32) + m1_b)
    e = jnp.dot(_bf16(e), m2_w, preferred_element_type=jnp.float32) + m2_b

    # F.normalize(dim=-1) — kept exact in f32 so output norms are 1 to f32 precision
    n = jnp.sqrt(jnp.sum(e * e, axis=-1, keepdims=True))
    o_ref[...] = e / jnp.maximum(n, NORM_EPS)


# ----------------------------- parameter init (PyTorch convention) -----------------------------
def init_params(key):
    keys = iter(jax.random.split(key, 128))

    def normal(shape, std=0.02):
        return std * jax.random.normal(next(keys), shape, dtype=jnp.float32)

    def zeros(shape):
        return jnp.zeros(shape, jnp.float32)

    def ones(shape):
        return jnp.ones(shape, jnp.float32)

    p = {
        "word_emb": normal((VOCAB, HIDDEN)),
        "pos_emb": normal((SEQ, HIDDEN)),
        "type_emb": normal((2, HIDDEN)),
        "emb_ln_g": ones((HIDDEN,)),
        "emb_ln_b": zeros((HIDDEN,)),
        "layers": [],
        "pool_w": normal((HIDDEN, HIDDEN)),
        "pool_b": zeros((HIDDEN,)),
        # mlp_embed: nn.Linear weights re-init with std = feature_dim ** -0.5
        "mlp_w1": normal((FEATURE_DIM, HIDDEN), std=FEATURE_DIM ** -0.5),
        "mlp_b1": zeros((FEATURE_DIM,)),
        "mlp_w2": normal((FEATURE_DIM, FEATURE_DIM), std=FEATURE_DIM ** -0.5),
        "mlp_b2": zeros((FEATURE_DIM,)),
    }
    for _ in range(NUM_LAYERS):
        p["layers"].append({
            "wq": normal((HIDDEN, HIDDEN)), "bq": zeros((HIDDEN,)),
            "wk": normal((HIDDEN, HIDDEN)), "bk": zeros((HIDDEN,)),
            "wv": normal((HIDDEN, HIDDEN)), "bv": zeros((HIDDEN,)),
            "wo": normal((HIDDEN, HIDDEN)), "bo": zeros((HIDDEN,)),
            "ln1_g": ones((HIDDEN,)), "ln1_b": zeros((HIDDEN,)),
            "w_ff1": normal((FFN, HIDDEN)), "b_ff1": zeros((FFN,)),
            "w_ff2": normal((HIDDEN, FFN)), "b_ff2": zeros((HIDDEN,)),
            "ln2_g": ones((HIDDEN,)), "ln2_b": zeros((HIDDEN,)),
        })
    return p


def prepare_kernel_params(p):
    """One-time repack (outside jit): transpose nn.Linear weights to (in, out), concat QKV,
    stack layers, pack all small vectors into slabs, cast matmul weights to bf16."""
    def pad_row(v, width):
        return jnp.pad(v, (0, width - v.shape[0]))

    wqkv, wo, wff1, wff2, lvec = [], [], [], [], []
    for lp in p["layers"]:
        wqkv.append(jnp.concatenate([lp["wq"].T, lp["wk"].T, lp["wv"].T], axis=1))
        wo.append(lp["wo"].T)
        wff1.append(lp["w_ff1"].T)
        wff2.append(lp["w_ff2"].T)
        lvec.append(jnp.stack([
            jnp.concatenate([lp["bq"], lp["bk"], lp["bv"]]),   # row 0: fused QKV bias (96)
            pad_row(lp["bo"], VEC_W),                          # row 1
            pad_row(lp["ln1_g"], VEC_W),                       # row 2
            pad_row(lp["ln1_b"], VEC_W),                       # row 3
            pad_row(lp["b_ff1"], VEC_W),                       # row 4 (64 valid)
            pad_row(lp["b_ff2"], VEC_W),                       # row 5
            pad_row(lp["ln2_g"], VEC_W),                       # row 6
            pad_row(lp["ln2_b"], VEC_W),                       # row 7
        ]))

    # pooler + mlp_embed weights lane-concatenated: (32, 32+16+16) = (32, 64)
    headw = jnp.concatenate([
        p["pool_w"].T,                                                    # (32, 32)
        p["mlp_w1"].T,                                                    # (32, 16)
        jnp.pad(p["mlp_w2"].T, ((0, HIDDEN - FEATURE_DIM), (0, 0))),      # (32, 16)
    ], axis=1)

    gvec = jnp.stack([
        p["emb_ln_g"],
        p["emb_ln_b"],
        p["pool_b"],
        pad_row(p["mlp_b1"], HIDDEN),
        pad_row(p["mlp_b2"], HIDDEN),
    ])  # (5, 32)

    return {
        "word_emb": p["word_emb"],
        "pos_emb": p["pos_emb"],
        "type_emb": p["type_emb"],
        "wqkv": jnp.stack(wqkv).astype(jnp.bfloat16),    # (L, 32, 96)
        "wo": jnp.stack(wo).astype(jnp.bfloat16),        # (L, 32, 32)
        "wff1": jnp.stack(wff1).astype(jnp.bfloat16),    # (L, 32, 64)
        "wff2": jnp.stack(wff2).astype(jnp.bfloat16),    # (L, 64, 32)
        "lvec": jnp.stack(lvec).astype(jnp.float32),     # (L, 8, 96)
        "headw": headw.astype(jnp.bfloat16),             # (32, 64)
        "gvec": gvec.astype(jnp.float32),                # (5, 32)
    }


# ----------------------------- forward (one pallas_call + tiny XLA glue) -----------------------------
_VMEM_SPEC = pl.BlockSpec(memory_space=pltpu.MemorySpace.VMEM)


@jax.jit
def path_bert_forward(kp, input_ids, attention_mask):
    b, s = input_ids.shape
    # token + position + segment(0) embeddings; the gather stays in XLA glue.
    x = (kp["word_emb"][input_ids]
         + kp["pos_emb"][None, :s, :]
         + kp["type_emb"][0][None, None, :])
    x = x.reshape(b * s, HIDDEN).astype(jnp.float32)

    # Additive attention bias (B*S, B*S): 0 where query & key belong to the same sequence
    # and the key is not padding, -1e9 otherwise.  Lets one score matrix per head cover
    # the whole batch inside the fused kernel.
    batch_ids = jnp.repeat(jnp.arange(b), s)
    key_valid = attention_mask.reshape(b * s) > 0
    allowed = (batch_ids[:, None] == batch_ids[None, :]) & key_valid[None, :]
    bias = jnp.where(allowed, 0.0, NEG_INF).astype(jnp.float32)

    # CLS rows are selected inside the kernel; output is already (B, FEATURE_DIM).
    return pl.pallas_call(
        _path_bert_kernel,
        out_shape=jax.ShapeDtypeStruct((b, FEATURE_DIM), jnp.float32),
        in_specs=[_VMEM_SPEC] * 9,
        out_specs=_VMEM_SPEC,
    )(
        x, bias,
        kp["wqkv"], kp["wo"], kp["wff1"], kp["wff2"],
        kp["lvec"], kp["headw"], kp["gvec"],
    )


# TODO(synk): the real module loads pretrained HF BERT weights (AutoModel.from_pretrained);
# here the encoder weights are synthetic deterministic draws (shapes match a tiny BERT
# config).  For BERT-base-sized weights this fully-VMEM-resident design must become a
# layer-streamed pipeline (grid over layers, bf16 weight slabs, double-buffered BlockSpec).

if __name__ == "__main__":
    key = jax.random.PRNGKey(0)
    pkey, ikey = jax.random.split(key)
    params = init_params(pkey)
    kparams = prepare_kernel_params(params)   # one-time weight repack, outside jit

    input_ids = jax.random.randint(ikey, (BATCH, SEQ), 0, VOCAB, dtype=jnp.int32)
    # second sequence has 2 padding positions
    seq_lens = jnp.array([[SEQ], [SEQ - 2]], dtype=jnp.int32)
    attention_mask = (jnp.arange(SEQ)[None, :] < seq_lens).astype(jnp.int32)

    out = path_bert_forward(kparams, input_ids, attention_mask)
    out = jax.block_until_ready(out)

    assert out.shape == (BATCH, FEATURE_DIM), out.shape
    norms = jnp.linalg.norm(out, axis=-1)
    assert bool(jnp.all(jnp.abs(norms - 1.0) < 1e-3)), norms
    print("KERNEL_OK")
</pallas_src>

<mosaic_0001>
module attributes {stable_mosaic.version = 11 : i64} {
  func.func @_path_bert_kernel(%arg0: memref<16x32xf32, #tpu.memory_space<vmem>>, %arg1: memref<16x16xf32, #tpu.memory_space<vmem>>, %arg2: memref<2x32x96xbf16, #tpu.memory_space<vmem>>, %arg3: memref<2x32x32xbf16, #tpu.memory_space<vmem>>, %arg4: memref<2x32x64xbf16, #tpu.memory_space<vmem>>, %arg5: memref<2x64x32xbf16, #tpu.memory_space<vmem>>, %arg6: memref<2x8x96xf32, #tpu.memory_space<vmem>>, %arg7: memref<32x64xbf16, #tpu.memory_space<vmem>>, %arg8: memref<5x32xf32, #tpu.memory_space<vmem>>, %arg9: memref<2x16xf32, #tpu.memory_space<vmem>>) attributes {dimension_semantics = [], scalar_prefetch = 0 : i64, scratch_operands = 0 : i64, tpu.core_type = #tpu.core_type<tc>} {
    %c0 = arith.constant 0 : index
    %c0_0 = arith.constant 0 : index
    %0 = vector.load %arg1[%c0, %c0_0] : memref<16x16xf32, #tpu.memory_space<vmem>>, vector<16x16xf32>
    %c0_1 = arith.constant 0 : index
    %c0_2 = arith.constant 0 : index
    %1 = vector.load %arg8[%c0_1, %c0_2] : memref<5x32xf32, #tpu.memory_space<vmem>>, vector<5x32xf32>
    %2 = vector.extract_strided_slice %1 {offsets = [0, 0], sizes = [1, 32], strides = [1, 1]} : vector<5x32xf32> to vector<1x32xf32>
    %3 = vector.extract_strided_slice %1 {offsets = [1, 0], sizes = [1, 32], strides = [1, 1]} : vector<5x32xf32> to vector<1x32xf32>
    %4 = vector.extract_strided_slice %1 {offsets = [2, 0], sizes = [1, 32], strides = [1, 1]} : vector<5x32xf32> to vector<1x32xf32>
    %5 = vector.extract_strided_slice %1 {offsets = [3, 0], sizes = [1, 16], strides = [1, 1]} : vector<5x32xf32> to vector<1x16xf32>
    %6 = vector.extract_strided_slice %1 {offsets = [4, 0], sizes = [1, 16], strides = [1, 1]} : vector<5x32xf32> to vector<1x16xf32>
    %c0_3 = arith.constant 0 : index
    %c0_4 = arith.constant 0 : index
    %7 = vector.load %arg0[%c0_3, %c0_4] : memref<16x32xf32, #tpu.memory_space<vmem>>, vector<16x32xf32>
    %cst = arith.constant dense<0.000000e+00> : vector<16xf32>
    %8 = vector.multi_reduction <add>, %7, %cst [1] : vector<16x32xf32> to vector<16xf32>
    %9 = vector.shape_cast %8 : vector<16xf32> to vector<16x1xf32>
    %cst_5 = arith.constant 3.200000e+01 : f32
    %10 = vector.broadcast %cst_5 : f32 to vector<16x1xf32>
    %11 = arith.divf %9, %10 : vector<16x1xf32>
    %12 = vector.broadcast %11 : vector<16x1xf32> to vector<16x32xf32>
    %13 = arith.subf %7, %12 : vector<16x32xf32>
    %14 = arith.mulf %13, %13 : vector<16x32xf32>
    %cst_6 = arith.constant dense<0.000000e+00> : vector<16xf32>
    %15 = vector.multi_reduction <add>, %14, %cst_6 [1] : vector<16x32xf32> to vector<16xf32>
    %16 = vector.shape_cast %15 : vector<16xf32> to vector<16x1xf32>
    %cst_7 = arith.constant 3.200000e+01 : f32
    %17 = vector.broadcast %cst_7 : f32 to vector<16x1xf32>
    %18 = arith.divf %16, %17 : vector<16x1xf32>
    %cst_8 = arith.constant 9.99999996E-13 : f32
    %19 = vector.broadcast %cst_8 : f32 to vector<16x1xf32>
    %20 = arith.addf %18, %19 : vector<16x1xf32>
    %21 = math.rsqrt %20 : vector<16x1xf32>
    %22 = vector.broadcast %21 : vector<16x1xf32> to vector<16x32xf32>
    %23 = arith.mulf %13, %22 : vector<16x32xf32>
    %24 = vector.broadcast %2 : vector<1x32xf32> to vector<16x32xf32>
    %25 = arith.mulf %23, %24 : vector<16x32xf32>
    %26 = vector.broadcast %3 : vector<1x32xf32> to vector<16x32xf32>
    %27 = arith.addf %25, %26 : vector<16x32xf32>
    %c0_9 = arith.constant 0 : index
    %c0_10 = arith.constant 0 : index
    %c0_11 = arith.constant 0 : index
    %28 = vector.load %arg6[%c0_9, %c0_10, %c0_11] : memref<2x8x96xf32, #tpu.memory_space<vmem>>, vector<1x8x96xf32>
    %29 = vector.shape_cast %28 : vector<1x8x96xf32> to vector<8x96xf32>
    %30 = vector.extract_strided_slice %29 {offsets = [0, 0], sizes = [1, 96], strides = [1, 1]} : vector<8x96xf32> to vector<1x96xf32>
    %31 = vector.extract_strided_slice %29 {offsets = [1, 0], sizes = [1, 32], strides = [1, 1]} : vector<8x96xf32> to vector<1x32xf32>
    %32 = vector.extract_strided_slice %29 {offsets = [2, 0], sizes = [1, 32], strides = [1, 1]} : vector<8x96xf32> to vector<1x32xf32>
    %33 = vector.extract_strided_slice %29 {offsets = [3, 0], sizes = [1, 32], strides = [1, 1]} : vector<8x96xf32> to vector<1x32xf32>
    %34 = vector.extract_strided_slice %29 {offsets = [4, 0], sizes = [1, 64], strides = [1, 1]} : vector<8x96xf32> to vector<1x64xf32>
    %35 = vector.extract_strided_slice %29 {offsets = [5, 0], sizes = [1, 32], strides = [1, 1]} : vector<8x96xf32> to vector<1x32xf32>
    %36 = vector.extract_strided_slice %29 {offsets = [6, 0], sizes = [1, 32], strides = [1, 1]} : vector<8x96xf32> to vector<1x32xf32>
    %37 = vector.extract_strided_slice %29 {offsets = [7, 0], sizes = [1, 32], strides = [1, 1]} : vector<8x96xf32> to vector<1x32xf32>
    %38 = arith.truncf %27 : vector<16x32xf32> to vector<16x32xbf16>
    %c0_12 = arith.constant 0 : index
    %c0_13 = arith.constant 0 : index
    %c0_14 = arith.constant 0 : index
    %39 = vector.load %arg2[%c0_12, %c0_13, %c0_14] : memref<2x32x96xbf16, #tpu.memory_space<vmem>>, vector<1x32x96xbf16>
    %40 = vector.shape_cast %39 : vector<1x32x96xbf16> to vector<32x96xbf16>
    %cst_15 = arith.constant dense<0.000000e+00> : vector<16x96xf32>
    %41 = tpu.matmul %38, %40, %cst_15 {dimension_numbers = #tpu.dot_dimension_numbers<[1], [0], [0], [1], [0, 0, 1, 1], [], []>} : vector<16x32xbf16>, vector<32x96xbf16>, vector<16x96xf32> -> vector<16x96xf32>
    %42 = vector.broadcast %30 : vector<1x96xf32> to vector<16x96xf32>
    %43 = arith.addf %41, %42 : vector<16x96xf32>
    %44 = vector.extract_strided_slice %43 {offsets = [0, 0], sizes = [16, 32], strides = [1, 1]} : vector<16x96xf32> to vector<16x32xf32>
    %45 = vector.extract_strided_slice %43 {offsets = [0, 32], sizes = [16, 32], strides = [1, 1]} : vector<16x96xf32> to vector<16x32xf32>
    %46 = tpu.transpose %45, [1, 0] : vector<16x32xf32> -> vector<32x16xf32>
    %47 = vector.extract_strided_slice %43 {offsets = [0, 64], sizes = [16, 32], strides = [1, 1]} : vector<16x96xf32> to vector<16x32xf32>
    %48 = vector.extract_strided_slice %44 {offsets = [0, 0], sizes = [16, 8], strides = [1, 1]} : vector<16x32xf32> to vector<16x8xf32>
    %49 = arith.truncf %48 : vector<16x8xf32> to vector<16x8xbf16>
    %50 = vector.extract_strided_slice %46 {offsets = [0, 0], sizes = [8, 16], strides = [1, 1]} : vector<32x16xf32> to vector<8x16xf32>
    %51 = arith.truncf %50 : vector<8x16xf32> to vector<8x16xbf16>
    %cst_16 = arith.constant dense<0.000000e+00> : vector<16x16xf32>
    %52 = tpu.matmul %49, %51, %cst_16 {dimension_numbers = #tpu.dot_dimension_numbers<[1], [0], [0], [1], [0, 0, 1, 1], [], []>} : vector<16x8xbf16>, vector<8x16xbf16>, vector<16x16xf32> -> vector<16x16xf32>
    %cst_17 = arith.constant 0.353553385 : f32
    %53 = vector.broadcast %cst_17 : f32 to vector<16x16xf32>
    %54 = arith.mulf %52, %53 : vector<16x16xf32>
    %55 = arith.addf %54, %0 : vector<16x16xf32>
    %cst_18 = arith.constant dense<0xFF800000> : vector<16xf32>
    %56 = vector.multi_reduction <maximumf>, %55, %cst_18 [1] : vector<16x16xf32> to vector<16xf32>
    %57 = vector.shape_cast %56 : vector<16xf32> to vector<16x1xf32>
    %58 = vector.broadcast %57 : vector<16x1xf32> to vector<16x16xf32>
    %59 = arith.subf %55, %58 : vector<16x16xf32>
    %60 = math.exp %59 : vector<16x16xf32>
    %cst_19 = arith.constant dense<0.000000e+00> : vector<16xf32>
    %61 = vector.multi_reduction <add>, %60, %cst_19 [1] : vector<16x16xf32> to vector<16xf32>
    %62 = vector.shape_cast %61 : vector<16xf32> to vector<16x1xf32>
    %63 = tpu.reciprocal %62 {approx = true} : vector<16x1xf32> -> vector<16x1xf32>
    %64 = vector.broadcast %63 : vector<16x1xf32> to vector<16x16xf32>
    %65 = arith.mulf %60, %64 : vector<16x16xf32>
    %66 = arith.truncf %65 : vector<16x16xf32> to vector<16x16xbf16>
    %67 = vector.extract_strided_slice %47 {offsets = [0, 0], sizes = [16, 8], strides = [1, 1]} : vector<16x32xf32> to vector<16x8xf32>
    %68 = arith.truncf %67 : vector<16x8xf32> to vector<16x8xbf16>
    %cst_20 = arith.constant dense<0.000000e+00> : vector<16x8xf32>
    %69 = tpu.matmul %66, %68, %cst_20 {dimension_numbers = #tpu.dot_dimension_numbers<[1], [0], [0], [1], [0, 0, 1, 1], [], []>} : vector<16x16xbf16>, vector<16x8xbf16>, vector<16x8xf32> -> vector<16x8xf32>
    %70 = vector.extract_strided_slice %44 {offsets = [0, 8], sizes = [16, 8], strides = [1, 1]} : vector<16x32xf32> to vector<16x8xf32>
    %71 = arith.truncf %70 : vector<16x8xf32> to vector<16x8xbf16>
    %72 = vector.extract_strided_slice %46 {offsets = [8, 0], sizes = [8, 16], strides = [1, 1]} : vector<32x16xf32> to vector<8x16xf32>
    %73 = arith.truncf %72 : vector<8x16xf32> to vector<8x16xbf16>
    %cst_21 = arith.constant dense<0.000000e+00> : vector<16x16xf32>
    %74 = tpu.matmul %71, %73, %cst_21 {dimension_numbers = #tpu.dot_dimension_numbers<[1], [0], [0], [1], [0, 0, 1, 1], [], []>} : vector<16x8xbf16>, vector<8x16xbf16>, vector<16x16xf32> -> vector<16x16xf32>
    %cst_22 = arith.constant 0.353553385 : f32
    %75 = vector.broadcast %cst_22 : f32 to vector<16x16xf32>
    %76 = arith.mulf %74, %75 : vector<16x16xf32>
    %77 = arith.addf %76, %0 : vector<16x16xf32>
    %cst_23 = arith.constant dense<0xFF800000> : vector<16xf32>
    %78 = vector.multi_reduction <maximumf>, %77, %cst_23 [1] : vector<16x16xf32> to vector<16xf32>
    %79 = vector.shape_cast %78 : vector<16xf32> to vector<16x1xf32>
    %80 = vector.broadcast %79 : vector<16x1xf32> to vector<16x16xf32>
    %81 = arith.subf %77, %80 : vector<16x16xf32>
    %82 = math.exp %81 : vector<16x16xf32>
    %cst_24 = arith.constant dense<0.000000e+00> : vector<16xf32>
    %83 = vector.multi_reduction <add>, %82, %cst_24 [1] : vector<16x16xf32> to vector<16xf32>
    %84 = vector.shape_cast %83 : vector<16xf32> to vector<16x1xf32>
    %85 = tpu.reciprocal %84 {approx = true} : vector<16x1xf32> -> vector<16x1xf32>
    %86 = vector.broadcast %85 : vector<16x1xf32> to vector<16x16xf32>
    %87 = arith.mulf %82, %86 : vector<16x16xf32>
    %88 = arith.truncf %87 : vector<16x16xf32> to vector<16x16xbf16>
    %89 = vector.extract_strided_slice %47 {offsets = [0, 8], sizes = [16, 8], strides = [1, 1]} : vector<16x32xf32> to vector<16x8xf32>
    %90 = arith.truncf %89 : vector<16x8xf32> to vector<16x8xbf16>
    %cst_25 = arith.constant dense<0.000000e+00> : vector<16x8xf32>
    %91 = tpu.matmul %88, %90, %cst_25 {dimension_numbers = #tpu.dot_dimension_numbers<[1], [0], [0], [1], [0, 0, 1, 1], [], []>} : vector<16x16xbf16>, vector<16x8xbf16>, vector<16x8xf32> -> vector<16x8xf32>
    %92 = vector.extract_strided_slice %44 {offsets = [0, 16], sizes = [16, 8], strides = [1, 1]} : vector<16x32xf32> to vector<16x8xf32>
    %93 = arith.truncf %92 : vector<16x8xf32> to vector<16x8xbf16>
    %94 = vector.extract_strided_slice %46 {offsets = [16, 0], sizes = [8, 16], strides = [1, 1]} : vector<32x16xf32> to vector<8x16xf32>
    %95 = arith.truncf %94 : vector<8x16xf32> to vector<8x16xbf16>
    %cst_26 = arith.constant dense<0.000000e+00> : vector<16x16xf32>
    %96 = tpu.matmul %93, %95, %cst_26 {dimension_numbers = #tpu.dot_dimension_numbers<[1], [0], [0], [1], [0, 0, 1, 1], [], []>} : vector<16x8xbf16>, vector<8x16xbf16>, vector<16x16xf32> -> vector<16x16xf32>
    %cst_27 = arith.constant 0.353553385 : f32
    %97 = vector.broadcast %cst_27 : f32 to vector<16x16xf32>
    %98 = arith.mulf %96, %97 : vector<16x16xf32>
    %99 = arith.addf %98, %0 : vector<16x16xf32>
    %cst_28 = arith.constant dense<0xFF800000> : vector<16xf32>
    %100 = vector.multi_reduction <maximumf>, %99, %cst_28 [1] : vector<16x16xf32> to vector<16xf32>
    %101 = vector.shape_cast %100 : vector<16xf32> to vector<16x1xf32>
    %102 = vector.broadcast %101 : vector<16x1xf32> to vector<16x16xf32>
    %103 = arith.subf %99, %102 : vector<16x16xf32>
    %104 = math.exp %103 : vector<16x16xf32>
    %cst_29 = arith.constant dense<0.000000e+00> : vector<16xf32>
    %105 = vector.multi_reduction <add>, %104, %cst_29 [1] : vector<16x16xf32> to vector<16xf32>
    %106 = vector.shape_cast %105 : vector<16xf32> to vector<16x1xf32>
    %107 = tpu.reciprocal %106 {approx = true} : vector<16x1xf32> -> vector<16x1xf32>
    %108 = vector.broadcast %107 : vector<16x1xf32> to vector<16x16xf32>
    %109 = arith.mulf %104, %108 : vector<16x16xf32>
    %110 = arith.truncf %109 : vector<16x16xf32> to vector<16x16xbf16>
    %111 = vector.extract_strided_slice %47 {offsets = [0, 16], sizes = [16, 8], strides = [1, 1]} : vector<16x32xf32> to vector<16x8xf32>
    %112 = arith.truncf %111 : vector<16x8xf32> to vector<16x8xbf16>
    %cst_30 = arith.constant dense<0.000000e+00> : vector<16x8xf32>
    %113 = tpu.matmul %110, %112, %cst_30 {dimension_numbers = #tpu.dot_dimension_numbers<[1], [0], [0], [1], [0, 0, 1, 1], [], []>} : vector<16x16xbf16>, vector<16x8xbf16>, vector<16x8xf32> -> vector<16x8xf32>
    %114 = vector.extract_strided_slice %44 {offsets = [0, 24], sizes = [16, 8], strides = [1, 1]} : vector<16x32xf32> to vector<16x8xf32>
    %115 = arith.truncf %114 : vector<16x8xf32> to vector<16x8xbf16>
    %116 = vector.extract_strided_slice %46 {offsets = [24, 0], sizes = [8, 16], strides = [1, 1]} : vector<32x16xf32> to vector<8x16xf32>
    %117 = arith.truncf %116 : vector<8x16xf32> to vector<8x16xbf16>
    %cst_31 = arith.constant dense<0.000000e+00> : vector<16x16xf32>
    %118 = tpu.matmul %115, %117, %cst_31 {dimension_numbers = #tpu.dot_dimension_numbers<[1], [0], [0], [1], [0, 0, 1, 1], [], []>} : vector<16x8xbf16>, vector<8x16xbf16>, vector<16x16xf32> -> vector<16x16xf32>
    %cst_32 = arith.constant 0.353553385 : f32
    %119 = vector.broadcast %cst_32 : f32 to vector<16x16xf32>
    %120 = arith.mulf %118, %119 : vector<16x16xf32>
    %121 = arith.addf %120, %0 : vector<16x16xf32>
    %cst_33 = arith.constant dense<0xFF800000> : vector<16xf32>
    %122 = vector.multi_reduction <maximumf>, %121, %cst_33 [1] : vector<16x16xf32> to vector<16xf32>
    %123 = vector.shape_cast %122 : vector<16xf32> to vector<16x1xf32>
    %124 = vector.broadcast %123 : vector<16x1xf32> to vector<16x16xf32>
    %125 = arith.subf %121, %124 : vector<16x16xf32>
    %126 = math.exp %125 : vector<16x16xf32>
    %cst_34 = arith.constant dense<0.000000e+00> : vector<16xf32>
    %127 = vector.multi_reduction <add>, %126, %cst_34 [1] : vector<16x16xf32> to vector<16xf32>
    %128 = vector.shape_cast %127 : vector<16xf32> to vector<16x1xf32>
    %129 = tpu.reciprocal %128 {approx = true} : vector<16x1xf32> -> vector<16x1xf32>
    %130 = vector.broadcast %129 : vector<16x1xf32> to vector<16x16xf32>
    %131 = arith.mulf %126, %130 : vector<16x16xf32>
    %132 = arith.truncf %131 : vector<16x16xf32> to vector<16x16xbf16>
    %133 = vector.extract_strided_slice %47 {offsets = [0, 24], sizes = [16, 8], strides = [1, 1]} : vector<16x32xf32> to vector<16x8xf32>
    %134 = arith.truncf %133 : vector<16x8xf32> to vector<16x8xbf16>
    %cst_35 = arith.constant dense<0.000000e+00> : vector<16x8xf32>
    %135 = tpu.matmul %132, %134, %cst_35 {dimension_numbers = #tpu.dot_dimension_numbers<[1], [0], [0], [1], [0, 0, 1, 1], [], []>} : vector<16x16xbf16>, vector<16x8xbf16>, vector<16x8xf32> -> vector<16x8xf32>
    %136 = tpu.concatenate %69, %91, %113, %135 in 1 : vector<16x8xf32>, vector<16x8xf32>, vector<16x8xf32>, vector<16x8xf32> -> vector<16x32xf32>
    %137 = arith.truncf %136 : vector<16x32xf32> to vector<16x32xbf16>
    %c0_36 = arith.constant 0 : index
    %c0_37 = arith.constant 0 : index
    %c0_38 = arith.constant 0 : index
    %138 = vector.load %arg3[%c0_36, %c0_37, %c0_38] : memref<2x32x32xbf16, #tpu.memory_space<vmem>>, vector<1x32x32xbf16>
    %139 = vector.shape_cast %138 : vector<1x32x32xbf16> to vector<32x32xbf16>
    %cst_39 = arith.constant dense<0.000000e+00> : vector<16x32xf32>
    %140 = tpu.matmul %137, %139, %cst_39 {dimension_numbers = #tpu.dot_dimension_numbers<[1], [0], [0], [1], [0, 0, 1, 1], [], []>} : vector<16x32xbf16>, vector<32x32xbf16>, vector<16x32xf32> -> vector<16x32xf32>
    %141 = arith.addf %27, %140 : vector<16x32xf32>
    %142 = vector.broadcast %31 : vector<1x32xf32> to vector<16x32xf32>
    %143 = arith.addf %141, %142 : vector<16x32xf32>
    %cst_40 = arith.constant dense<0.000000e+00> : vector<16xf32>
    %144 = vector.multi_reduction <add>, %143, %cst_40 [1] : vector<16x32xf32> to vector<16xf32>
    %145 = vector.shape_cast %144 : vector<16xf32> to vector<16x1xf32>
    %cst_41 = arith.constant 3.200000e+01 : f32
    %146 = vector.broadcast %cst_41 : f32 to vector<16x1xf32>
    %147 = arith.divf %145, %146 : vector<16x1xf32>
    %148 = vector.broadcast %147 : vector<16x1xf32> to vector<16x32xf32>
    %149 = arith.subf %143, %148 : vector<16x32xf32>
    %150 = arith.mulf %149, %149 : vector<16x32xf32>
    %cst_42 = arith.constant dense<0.000000e+00> : vector<16xf32>
    %151 = vector.multi_reduction <add>, %150, %cst_42 [1] : vector<16x32xf32> to vector<16xf32>
    %152 = vector.shape_cast %151 : vector<16xf32> to vector<16x1xf32>
    %cst_43 = arith.constant 3.200000e+01 : f32
    %153 = vector.broadcast %cst_43 : f32 to vector<16x1xf32>
    %154 = arith.divf %152, %153 : vector<16x1xf32>
    %cst_44 = arith.constant 9.99999996E-13 : f32
    %155 = vector.broadcast %cst_44 : f32 to vector<16x1xf32>
    %156 = arith.addf %154, %155 : vector<16x1xf32>
    %157 = math.rsqrt %156 : vector<16x1xf32>
    %158 = vector.broadcast %157 : vector<16x1xf32> to vector<16x32xf32>
    %159 = arith.mulf %149, %158 : vector<16x32xf32>
    %160 = vector.broadcast %32 : vector<1x32xf32> to vector<16x32xf32>
    %161 = arith.mulf %159, %160 : vector<16x32xf32>
    %162 = vector.broadcast %33 : vector<1x32xf32> to vector<16x32xf32>
    %163 = arith.addf %161, %162 : vector<16x32xf32>
    %164 = arith.truncf %163 : vector<16x32xf32> to vector<16x32xbf16>
    %c0_45 = arith.constant 0 : index
    %c0_46 = arith.constant 0 : index
    %c0_47 = arith.constant 0 : index
    %165 = vector.load %arg4[%c0_45, %c0_46, %c0_47] : memref<2x32x64xbf16, #tpu.memory_space<vmem>>, vector<1x32x64xbf16>
    %166 = vector.shape_cast %165 : vector<1x32x64xbf16> to vector<32x64xbf16>
    %cst_48 = arith.constant dense<0.000000e+00> : vector<16x64xf32>
    %167 = tpu.matmul %164, %166, %cst_48 {dimension_numbers = #tpu.dot_dimension_numbers<[1], [0], [0], [1], [0, 0, 1, 1], [], []>} : vector<16x32xbf16>, vector<32x64xbf16>, vector<16x64xf32> -> vector<16x64xf32>
    %168 = vector.broadcast %34 : vector<1x64xf32> to vector<16x64xf32>
    %169 = arith.addf %167, %168 : vector<16x64xf32>
    %cst_49 = arith.constant 5.000000e-01 : f32
    %170 = vector.broadcast %cst_49 : f32 to vector<16x64xf32>
    %171 = arith.mulf %170, %169 : vector<16x64xf32>
    %cst_50 = arith.constant 0.707106769 : f32
    %172 = vector.broadcast %cst_50 : f32 to vector<16x64xf32>
    %173 = arith.mulf %169, %172 : vector<16x64xf32>
    %cst_51 = arith.constant 0.000000e+00 : f32
    %174 = vector.broadcast %cst_51 : f32 to vector<16x64xf32>
    %175 = arith.cmpf oge, %173, %174 : vector<16x64xf32>
    %cst_52 = arith.constant 1.000000e+00 : f32
    %cst_53 = arith.constant -1.000000e+00 : f32
    %176 = vector.broadcast %cst_52 : f32 to vector<16x64xf32>
    %177 = vector.broadcast %cst_53 : f32 to vector<16x64xf32>
    %178 = arith.select %175, %176, %177 : vector<16x64xi1>, vector<16x64xf32>
    %179 = math.absf %173 : vector<16x64xf32>
    %cst_54 = arith.constant 0.327591091 : f32
    %180 = vector.broadcast %cst_54 : f32 to vector<16x64xf32>
    %181 = arith.mulf %180, %179 : vector<16x64xf32>
    %cst_55 = arith.constant 1.000000e+00 : f32
    %182 = vector.broadcast %cst_55 : f32 to vector<16x64xf32>
    %183 = arith.addf %182, %181 : vector<16x64xf32>
    %cst_56 = arith.constant 1.000000e+00 : f32
    %184 = vector.broadcast %cst_56 : f32 to vector<16x64xf32>
    %185 = arith.divf %184, %183 : vector<16x64xf32>
    %cst_57 = arith.constant 1.06140542 : f32
    %186 = vector.broadcast %cst_57 : f32 to vector<16x64xf32>
    %187 = arith.mulf %186, %185 : vector<16x64xf32>
    %cst_58 = arith.constant -1.45315206 : f32
    %188 = vector.broadcast %cst_58 : f32 to vector<16x64xf32>
    %189 = arith.addf %187, %188 : vector<16x64xf32>
    %190 = arith.mulf %189, %185 : vector<16x64xf32>
    %cst_59 = arith.constant 1.42141378 : f32
    %191 = vector.broadcast %cst_59 : f32 to vector<16x64xf32>
    %192 = arith.addf %190, %191 : vector<16x64xf32>
    %193 = arith.mulf %192, %185 : vector<16x64xf32>
    %cst_60 = arith.constant -0.284496725 : f32
    %194 = vector.broadcast %cst_60 : f32 to vector<16x64xf32>
    %195 = arith.addf %193, %194 : vector<16x64xf32>
    %196 = arith.mulf %195, %185 : vector<16x64xf32>
    %cst_61 = arith.constant 0.254829586 : f32
    %197 = vector.broadcast %cst_61 : f32 to vector<16x64xf32>
    %198 = arith.addf %196, %197 : vector<16x64xf32>
    %199 = arith.mulf %198, %185 : vector<16x64xf32>
    %cst_62 = arith.constant 0.000000e+00 : f32
    %200 = vector.broadcast %cst_62 : f32 to vector<16x64xf32>
    %201 = arith.subf %200, %179 : vector<16x64xf32>
    %202 = arith.mulf %201, %179 : vector<16x64xf32>
    %203 = math.exp %202 : vector<16x64xf32>
    %204 = arith.mulf %199, %203 : vector<16x64xf32>
    %cst_63 = arith.constant 1.000000e+00 : f32
    %205 = vector.broadcast %cst_63 : f32 to vector<16x64xf32>
    %206 = arith.subf %205, %204 : vector<16x64xf32>
    %207 = arith.mulf %178, %206 : vector<16x64xf32>
    %cst_64 = arith.constant 1.000000e+00 : f32
    %208 = vector.broadcast %cst_64 : f32 to vector<16x64xf32>
    %209 = arith.addf %208, %207 : vector<16x64xf32>
    %210 = arith.mulf %171, %209 : vector<16x64xf32>
    %211 = arith.truncf %210 : vector<16x64xf32> to vector<16x64xbf16>
    %c0_65 = arith.constant 0 : index
    %c0_66 = arith.constant 0 : index
    %c0_67 = arith.constant 0 : index
    %212 = vector.load %arg5[%c0_65, %c0_66, %c0_67] : memref<2x64x32xbf16, #tpu.memory_space<vmem>>, vector<1x64x32xbf16>
    %213 = vector.shape_cast %212 : vector<1x64x32xbf16> to vector<64x32xbf16>
    %cst_68 = arith.constant dense<0.000000e+00> : vector<16x32xf32>
    %214 = tpu.matmul %211, %213, %cst_68 {dimension_numbers = #tpu.dot_dimension_numbers<[1], [0], [0], [1], [0, 0, 1, 1], [], []>} : vector<16x64xbf16>, vector<64x32xbf16>, vector<16x32xf32> -> vector<16x32xf32>
    %215 = vector.broadcast %35 : vector<1x32xf32> to vector<16x32xf32>
    %216 = arith.addf %214, %215 : vector<16x32xf32>
    %217 = arith.addf %163, %216 : vector<16x32xf32>
    %cst_69 = arith.constant dense<0.000000e+00> : vector<16xf32>
    %218 = vector.multi_reduction <add>, %217, %cst_69 [1] : vector<16x32xf32> to vector<16xf32>
    %219 = vector.shape_cast %218 : vector<16xf32> to vector<16x1xf32>
    %cst_70 = arith.constant 3.200000e+01 : f32
    %220 = vector.broadcast %cst_70 : f32 to vector<16x1xf32>
    %221 = arith.divf %219, %220 : vector<16x1xf32>
    %222 = vector.broadcast %221 : vector<16x1xf32> to vector<16x32xf32>
    %223 = arith.subf %217, %222 : vector<16x32xf32>
    %224 = arith.mulf %223, %223 : vector<16x32xf32>
    %cst_71 = arith.constant dense<0.000000e+00> : vector<16xf32>
    %225 = vector.multi_reduction <add>, %224, %cst_71 [1] : vector<16x32xf32> to vector<16xf32>
    %226 = vector.shape_cast %225 : vector<16xf32> to vector<16x1xf32>
    %cst_72 = arith.constant 3.200000e+01 : f32
    %227 = vector.broadcast %cst_72 : f32 to vector<16x1xf32>
    %228 = arith.divf %226, %227 : vector<16x1xf32>
    %cst_73 = arith.constant 9.99999996E-13 : f32
    %229 = vector.broadcast %cst_73 : f32 to vector<16x1xf32>
    %230 = arith.addf %228, %229 : vector<16x1xf32>
    %231 = math.rsqrt %230 : vector<16x1xf32>
    %232 = vector.broadcast %231 : vector<16x1xf32> to vector<16x32xf32>
    %233 = arith.mulf %223, %232 : vector<16x32xf32>
    %234 = vector.broadcast %36 : vector<1x32xf32> to vector<16x32xf32>
    %235 = arith.mulf %233, %234 : vector<16x32xf32>
    %236 = vector.broadcast %37 : vector<1x32xf32> to vector<16x32xf32>
    %237 = arith.addf %235, %236 : vector<16x32xf32>
    %c1 = arith.constant 1 : index
    %c0_74 = arith.constant 0 : index
    %c0_75 = arith.constant 0 : index
    %238 = vector.load %arg6[%c1, %c0_74, %c0_75] : memref<2x8x96xf32, #tpu.memory_space<vmem>>, vector<1x8x96xf32>
    %239 = vector.shape_cast %238 : vector<1x8x96xf32> to vector<8x96xf32>
    %240 = vector.extract_strided_slice %239 {offsets = [0, 0], sizes = [1, 96], strides = [1, 1]} : vector<8x96xf32> to vector<1x96xf32>
    %241 = vector.extract_strided_slice %239 {offsets = [1, 0], sizes = [1, 32], strides = [1, 1]} : vector<8x96xf32> to vector<1x32xf32>
    %242 = vector.extract_strided_slice %239 {offsets = [2, 0], sizes = [1, 32], strides = [1, 1]} : vector<8x96xf32> to vector<1x32xf32>
    %243 = vector.extract_strided_slice %239 {offsets = [3, 0], sizes = [1, 32], strides = [1, 1]} : vector<8x96xf32> to vector<1x32xf32>
    %244 = vector.extract_strided_slice %239 {offsets = [4, 0], sizes = [1, 64], strides = [1, 1]} : vector<8x96xf32> to vector<1x64xf32>
    %245 = vector.extract_strided_slice %239 {offsets = [5, 0], sizes = [1, 32], strides = [1, 1]} : vector<8x96xf32> to vector<1x32xf32>
    %246 = vector.extract_strided_slice %239 {offsets = [6, 0], sizes = [1, 32], strides = [1, 1]} : vector<8x96xf32> to vector<1x32xf32>
    %247 = vector.extract_strided_slice %239 {offsets = [7, 0], sizes = [1, 32], strides = [1, 1]} : vector<8x96xf32> to vector<1x32xf32>
    %248 = arith.truncf %237 : vector<16x32xf32> to vector<16x32xbf16>
    %c1_76 = arith.constant 1 : index
    %c0_77 = arith.constant 0 : index
    %c0_78 = arith.constant 0 : index
    %249 = vector.load %arg2[%c1_76, %c0_77, %c0_78] : memref<2x32x96xbf16, #tpu.memory_space<vmem>>, vector<1x32x96xbf16>
    %250 = vector.shape_cast %249 : vector<1x32x96xbf16> to vector<32x96xbf16>
    %cst_79 = arith.constant dense<0.000000e+00> : vector<16x96xf32>
    %251 = tpu.matmul %248, %250, %cst_79 {dimension_numbers = #tpu.dot_dimension_numbers<[1], [0], [0], [1], [0, 0, 1, 1], [], []>} : vector<16x32xbf16>, vector<32x96xbf16>, vector<16x96xf32> -> vector<16x96xf32>
    %252 = vector.broadcast %240 : vector<1x96xf32> to vector<16x96xf32>
    %253 = arith.addf %251, %252 : vector<16x96xf32>
    %254 = vector.extract_strided_slice %253 {offsets = [0, 0], sizes = [16, 32], strides = [1, 1]} : vector<16x96xf32> to vector<16x32xf32>
    %255 = vector.extract_strided_slice %253 {offsets = [0, 32], sizes = [16, 32], strides = [1, 1]} : vector<16x96xf32> to vector<16x32xf32>
    %256 = tpu.transpose %255, [1, 0] : vector<16x32xf32> -> vector<32x16xf32>
    %257 = vector.extract_strided_slice %253 {offsets = [0, 64], sizes = [16, 32], strides = [1, 1]} : vector<16x96xf32> to vector<16x32xf32>
    %258 = vector.extract_strided_slice %254 {offsets = [0, 0], sizes = [16, 8], strides = [1, 1]} : vector<16x32xf32> to vector<16x8xf32>
    %259 = arith.truncf %258 : vector<16x8xf32> to vector<16x8xbf16>
    %260 = vector.extract_strided_slice %256 {offsets = [0, 0], sizes = [8, 16], strides = [1, 1]} : vector<32x16xf32> to vector<8x16xf32>
    %261 = arith.truncf %260 : vector<8x16xf32> to vector<8x16xbf16>
    %cst_80 = arith.constant dense<0.000000e+00> : vector<16x16xf32>
    %262 = tpu.matmul %259, %261, %cst_80 {dimension_numbers = #tpu.dot_dimension_numbers<[1], [0], [0], [1], [0, 0, 1, 1], [], []>} : vector<16x8xbf16>, vector<8x16xbf16>, vector<16x16xf32> -> vector<16x16xf32>
    %cst_81 = arith.constant 0.353553385 : f32
    %263 = vector.broadcast %cst_81 : f32 to vector<16x16xf32>
    %264 = arith.mulf %262, %263 : vector<16x16xf32>
    %265 = arith.addf %264, %0 : vector<16x16xf32>
    %cst_82 = arith.constant dense<0xFF800000> : vector<16xf32>
    %266 = vector.multi_reduction <maximumf>, %265, %cst_82 [1] : vector<16x16xf32> to vector<16xf32>
    %267 = vector.shape_cast %266 : vector<16xf32> to vector<16x1xf32>
    %268 = vector.broadcast %267 : vector<16x1xf32> to vector<16x16xf32>
    %269 = arith.subf %265, %268 : vector<16x16xf32>
    %270 = math.exp %269 : vector<16x16xf32>
    %cst_83 = arith.constant dense<0.000000e+00> : vector<16xf32>
    %271 = vector.multi_reduction <add>, %270, %cst_83 [1] : vector<16x16xf32> to vector<16xf32>
    %272 = vector.shape_cast %271 : vector<16xf32> to vector<16x1xf32>
    %273 = tpu.reciprocal %272 {approx = true} : vector<16x1xf32> -> vector<16x1xf32>
    %274 = vector.broadcast %273 : vector<16x1xf32> to vector<16x16xf32>
    %275 = arith.mulf %270, %274 : vector<16x16xf32>
    %276 = arith.truncf %275 : vector<16x16xf32> to vector<16x16xbf16>
    %277 = vector.extract_strided_slice %257 {offsets = [0, 0], sizes = [16, 8], strides = [1, 1]} : vector<16x32xf32> to vector<16x8xf32>
    %278 = arith.truncf %277 : vector<16x8xf32> to vector<16x8xbf16>
    %cst_84 = arith.constant dense<0.000000e+00> : vector<16x8xf32>
    %279 = tpu.matmul %276, %278, %cst_84 {dimension_numbers = #tpu.dot_dimension_numbers<[1], [0], [0], [1], [0, 0, 1, 1], [], []>} : vector<16x16xbf16>, vector<16x8xbf16>, vector<16x8xf32> -> vector<16x8xf32>
    %280 = vector.extract_strided_slice %254 {offsets = [0, 8], sizes = [16, 8], strides = [1, 1]} : vector<16x32xf32> to vector<16x8xf32>
    %281 = arith.truncf %280 : vector<16x8xf32> to vector<16x8xbf16>
    %282 = vector.extract_strided_slice %256 {offsets = [8, 0], sizes = [8, 16], strides = [1, 1]} : vector<32x16xf32> to vector<8x16xf32>
    %283 = arith.truncf %282 : vector<8x16xf32> to vector<8x16xbf16>
    %cst_85 = arith.constant dense<0.000000e+00> : vector<16x16xf32>
    %284 = tpu.matmul %281, %283, %cst_85 {dimension_numbers = #tpu.dot_dimension_numbers<[1], [0], [0], [1], [0, 0, 1, 1], [], []>} : vector<16x8xbf16>, vector<8x16xbf16>, vector<16x16xf32> -> vector<16x16xf32>
    %cst_86 = arith.constant 0.353553385 : f32
    %285 = vector.broadcast %cst_86 : f32 to vector<16x16xf32>
    %286 = arith.mulf %284, %285 : vector<16x16xf32>
    %287 = arith.addf %286, %0 : vector<16x16xf32>
    %cst_87 = arith.constant dense<0xFF800000> : vector<16xf32>
    %288 = vector.multi_reduction <maximumf>, %287, %cst_87 [1] : vector<16x16xf32> to vector<16xf32>
    %289 = vector.shape_cast %288 : vector<16xf32> to vector<16x1xf32>
    %290 = vector.broadcast %289 : vector<16x1xf32> to vector<16x16xf32>
    %291 = arith.subf %287, %290 : vector<16x16xf32>
    %292 = math.exp %291 : vector<16x16xf32>
    %cst_88 = arith.constant dense<0.000000e+00> : vector<16xf32>
    %293 = vector.multi_reduction <add>, %292, %cst_88 [1] : vector<16x16xf32> to vector<16xf32>
    %294 = vector.shape_cast %293 : vector<16xf32> to vector<16x1xf32>
    %295 = tpu.reciprocal %294 {approx = true} : vector<16x1xf32> -> vector<16x1xf32>
    %296 = vector.broadcast %295 : vector<16x1xf32> to vector<16x16xf32>
    %297 = arith.mulf %292, %296 : vector<16x16xf32>
    %298 = arith.truncf %297 : vector<16x16xf32> to vector<16x16xbf16>
    %299 = vector.extract_strided_slice %257 {offsets = [0, 8], sizes = [16, 8], strides = [1, 1]} : vector<16x32xf32> to vector<16x8xf32>
    %300 = arith.truncf %299 : vector<16x8xf32> to vector<16x8xbf16>
    %cst_89 = arith.constant dense<0.000000e+00> : vector<16x8xf32>
    %301 = tpu.matmul %298, %300, %cst_89 {dimension_numbers = #tpu.dot_dimension_numbers<[1], [0], [0], [1], [0, 0, 1, 1], [], []>} : vector<16x16xbf16>, vector<16x8xbf16>, vector<16x8xf32> -> vector<16x8xf32>
    %302 = vector.extract_strided_slice %254 {offsets = [0, 16], sizes = [16, 8], strides = [1, 1]} : vector<16x32xf32> to vector<16x8xf32>
    %303 = arith.truncf %302 : vector<16x8xf32> to vector<16x8xbf16>
    %304 = vector.extract_strided_slice %256 {offsets = [16, 0], sizes = [8, 16], strides = [1, 1]} : vector<32x16xf32> to vector<8x16xf32>
    %305 = arith.truncf %304 : vector<8x16xf32> to vector<8x16xbf16>
    %cst_90 = arith.constant dense<0.000000e+00> : vector<16x16xf32>
    %306 = tpu.matmul %303, %305, %cst_90 {dimension_numbers = #tpu.dot_dimension_numbers<[1], [0], [0], [1], [0, 0, 1, 1], [], []>} : vector<16x8xbf16>, vector<8x16xbf16>, vector<16x16xf32> -> vector<16x16xf32>
    %cst_91 = arith.constant 0.353553385 : f32
    %307 = vector.broadcast %cst_91 : f32 to vector<16x16xf32>
    %308 = arith.mulf %306, %307 : vector<16x16xf32>
    %309 = arith.addf %308, %0 : vector<16x16xf32>
    %cst_92 = arith.constant dense<0xFF800000> : vector<16xf32>
    %310 = vector.multi_reduction <maximumf>, %309, %cst_92 [1] : vector<16x16xf32> to vector<16xf32>
    %311 = vector.shape_cast %310 : vector<16xf32> to vector<16x1xf32>
    %312 = vector.broadcast %311 : vector<16x1xf32> to vector<16x16xf32>
    %313 = arith.subf %309, %312 : vector<16x16xf32>
    %314 = math.exp %313 : vector<16x16xf32>
    %cst_93 = arith.constant dense<0.000000e+00> : vector<16xf32>
    %315 = vector.multi_reduction <add>, %314, %cst_93 [1] : vector<16x16xf32> to vector<16xf32>
    %316 = vector.shape_cast %315 : vector<16xf32> to vector<16x1xf32>
    %317 = tpu.reciprocal %316 {approx = true} : vector<16x1xf32> -> vector<16x1xf32>
    %318 = vector.broadcast %317 : vector<16x1xf32> to vector<16x16xf32>
    %319 = arith.mulf %314, %318 : vector<16x16xf32>
    %320 = arith.truncf %319 : vector<16x16xf32> to vector<16x16xbf16>
    %321 = vector.extract_strided_slice %257 {offsets = [0, 16], sizes = [16, 8], strides = [1, 1]} : vector<16x32xf32> to vector<16x8xf32>
    %322 = arith.truncf %321 : vector<16x8xf32> to vector<16x8xbf16>
    %cst_94 = arith.constant dense<0.000000e+00> : vector<16x8xf32>
    %323 = tpu.matmul %320, %322, %cst_94 {dimension_numbers = #tpu.dot_dimension_numbers<[1], [0], [0], [1], [0, 0, 1, 1], [], []>} : vector<16x16xbf16>, vector<16x8xbf16>, vector<16x8xf32> -> vector<16x8xf32>
    %324 = vector.extract_strided_slice %254 {offsets = [0, 24], sizes = [16, 8], strides = [1, 1]} : vector<16x32xf32> to vector<16x8xf32>
    %325 = arith.truncf %324 : vector<16x8xf32> to vector<16x8xbf16>
    %326 = vector.extract_strided_slice %256 {offsets = [24, 0], sizes = [8, 16], strides = [1, 1]} : vector<32x16xf32> to vector<8x16xf32>
    %327 = arith.truncf %326 : vector<8x16xf32> to vector<8x16xbf16>
    %cst_95 = arith.constant dense<0.000000e+00> : vector<16x16xf32>
    %328 = tpu.matmul %325, %327, %cst_95 {dimension_numbers = #tpu.dot_dimension_numbers<[1], [0], [0], [1], [0, 0, 1, 1], [], []>} : vector<16x8xbf16>, vector<8x16xbf16>, vector<16x16xf32> -> vector<16x16xf32>
    %cst_96 = arith.constant 0.353553385 : f32
    %329 = vector.broadcast %cst_96 : f32 to vector<16x16xf32>
    %330 = arith.mulf %328, %329 : vector<16x16xf32>
    %331 = arith.addf %330, %0 : vector<16x16xf32>
    %cst_97 = arith.constant dense<0xFF800000> : vector<16xf32>
    %332 = vector.multi_reduction <maximumf>, %331, %cst_97 [1] : vector<16x16xf32> to vector<16xf32>
    %333 = vector.shape_cast %332 : vector<16xf32> to vector<16x1xf32>
    %334 = vector.broadcast %333 : vector<16x1xf32> to vector<16x16xf32>
    %335 = arith.subf %331, %334 : vector<16x16xf32>
    %336 = math.exp %335 : vector<16x16xf32>
    %cst_98 = arith.constant dense<0.000000e+00> : vector<16xf32>
    %337 = vector.multi_reduction <add>, %336, %cst_98 [1] : vector<16x16xf32> to vector<16xf32>
    %338 = vector.shape_cast %337 : vector<16xf32> to vector<16x1xf32>
    %339 = tpu.reciprocal %338 {approx = true} : vector<16x1xf32> -> vector<16x1xf32>
    %340 = vector.broadcast %339 : vector<16x1xf32> to vector<16x16xf32>
    %341 = arith.mulf %336, %340 : vector<16x16xf32>
    %342 = arith.truncf %341 : vector<16x16xf32> to vector<16x16xbf16>
    %343 = vector.extract_strided_slice %257 {offsets = [0, 24], sizes = [16, 8], strides = [1, 1]} : vector<16x32xf32> to vector<16x8xf32>
    %344 = arith.truncf %343 : vector<16x8xf32> to vector<16x8xbf16>
    %cst_99 = arith.constant dense<0.000000e+00> : vector<16x8xf32>
    %345 = tpu.matmul %342, %344, %cst_99 {dimension_numbers = #tpu.dot_dimension_numbers<[1], [0], [0], [1], [0, 0, 1, 1], [], []>} : vector<16x16xbf16>, vector<16x8xbf16>, vector<16x8xf32> -> vector<16x8xf32>
    %346 = tpu.concatenate %279, %301, %323, %345 in 1 : vector<16x8xf32>, vector<16x8xf32>, vector<16x8xf32>, vector<16x8xf32> -> vector<16x32xf32>
    %347 = arith.truncf %346 : vector<16x32xf32> to vector<16x32xbf16>
    %c1_100 = arith.constant 1 : index
    %c0_101 = arith.constant 0 : index
    %c0_102 = arith.constant 0 : index
    %348 = vector.load %arg3[%c1_100, %c0_101, %c0_102] : memref<2x32x32xbf16, #tpu.memory_space<vmem>>, vector<1x32x32xbf16>
    %349 = vector.shape_cast %348 : vector<1x32x32xbf16> to vector<32x32xbf16>
    %cst_103 = arith.constant dense<0.000000e+00> : vector<16x32xf32>
    %350 = tpu.matmul %347, %349, %cst_103 {dimension_numbers = #tpu.dot_dimension_numbers<[1], [0], [0], [1], [0, 0, 1, 1], [], []>} : vector<16x32xbf16>, vector<32x32xbf16>, vector<16x32xf32> -> vector<16x32xf32>
    %351 = arith.addf %237, %350 : vector<16x32xf32>
    %352 = vector.broadcast %241 : vector<1x32xf32> to vector<16x32xf32>
    %353 = arith.addf %351, %352 : vector<16x32xf32>
    %cst_104 = arith.constant dense<0.000000e+00> : vector<16xf32>
    %354 = vector.multi_reduction <add>, %353, %cst_104 [1] : vector<16x32xf32> to vector<16xf32>
    %355 = vector.shape_cast %354 : vector<16xf32> to vector<16x1xf32>
    %cst_105 = arith.constant 3.200000e+01 : f32
    %356 = vector.broadcast %cst_105 : f32 to vector<16x1xf32>
    %357 = arith.divf %355, %356 : vector<16x1xf32>
    %358 = vector.broadcast %357 : vector<16x1xf32> to vector<16x32xf32>
    %359 = arith.subf %353, %358 : vector<16x32xf32>
    %360 = arith.mulf %359, %359 : vector<16x32xf32>
    %cst_106 = arith.constant dense<0.000000e+00> : vector<16xf32>
    %361 = vector.multi_reduction <add>, %360, %cst_106 [1] : vector<16x32xf32> to vector<16xf32>
    %362 = vector.shape_cast %361 : vector<16xf32> to vector<16x1xf32>
    %cst_107 = arith.constant 3.200000e+01 : f32
    %363 = vector.broadcast %cst_107 : f32 to vector<16x1xf32>
    %364 = arith.divf %362, %363 : vector<16x1xf32>
    %cst_108 = arith.constant 9.99999996E-13 : f32
    %365 = vector.broadcast %cst_108 : f32 to vector<16x1xf32>
    %366 = arith.addf %364, %365 : vector<16x1xf32>
    %367 = math.rsqrt %366 : vector<16x1xf32>
    %368 = vector.broadcast %367 : vector<16x1xf32> to vector<16x32xf32>
    %369 = arith.mulf %359, %368 : vector<16x32xf32>
    %370 = vector.broadcast %242 : vector<1x32xf32> to vector<16x32xf32>
    %371 = arith.mulf %369, %370 : vector<16x32xf32>
    %372 = vector.broadcast %243 : vector<1x32xf32> to vector<16x32xf32>
    %373 = arith.addf %371, %372 : vector<16x32xf32>
    %374 = arith.truncf %373 : vector<16x32xf32> to vector<16x32xbf16>
    %c1_109 = arith.constant 1 : index
    %c0_110 = arith.constant 0 : index
    %c0_111 = arith.constant 0 : index
    %375 = vector.load %arg4[%c1_109, %c0_110, %c0_111] : memref<2x32x64xbf16, #tpu.memory_space<vmem>>, vector<1x32x64xbf16>
    %376 = vector.shape_cast %375 : vector<1x32x64xbf16> to vector<32x64xbf16>
    %cst_112 = arith.constant dense<0.000000e+00> : vector<16x64xf32>
    %377 = tpu.matmul %374, %376, %cst_112 {dimension_numbers = #tpu.dot_dimension_numbers<[1], [0], [0], [1], [0, 0, 1, 1], [], []>} : vector<16x32xbf16>, vector<32x64xbf16>, vector<16x64xf32> -> vector<16x64xf32>
    %378 = vector.broadcast %244 : vector<1x64xf32> to vector<16x64xf32>
    %379 = arith.addf %377, %378 : vector<16x64xf32>
    %cst_113 = arith.constant 5.000000e-01 : f32
    %380 = vector.broadcast %cst_113 : f32 to vector<16x64xf32>
    %381 = arith.mulf %380, %379 : vector<16x64xf32>
    %cst_114 = arith.constant 0.707106769 : f32
    %382 = vector.broadcast %cst_114 : f32 to vector<16x64xf32>
    %383 = arith.mulf %379, %382 : vector<16x64xf32>
    %cst_115 = arith.constant 0.000000e+00 : f32
    %384 = vector.broadcast %cst_115 : f32 to vector<16x64xf32>
    %385 = arith.cmpf oge, %383, %384 : vector<16x64xf32>
    %cst_116 = arith.constant 1.000000e+00 : f32
    %cst_117 = arith.constant -1.000000e+00 : f32
    %386 = vector.broadcast %cst_116 : f32 to vector<16x64xf32>
    %387 = vector.broadcast %cst_117 : f32 to vector<16x64xf32>
    %388 = arith.select %385, %386, %387 : vector<16x64xi1>, vector<16x64xf32>
    %389 = math.absf %383 : vector<16x64xf32>
    %cst_118 = arith.constant 0.327591091 : f32
    %390 = vector.broadcast %cst_118 : f32 to vector<16x64xf32>
    %391 = arith.mulf %390, %389 : vector<16x64xf32>
    %cst_119 = arith.constant 1.000000e+00 : f32
    %392 = vector.broadcast %cst_119 : f32 to vector<16x64xf32>
    %393 = arith.addf %392, %391 : vector<16x64xf32>
    %cst_120 = arith.constant 1.000000e+00 : f32
    %394 = vector.broadcast %cst_120 : f32 to vector<16x64xf32>
    %395 = arith.divf %394, %393 : vector<16x64xf32>
    %cst_121 = arith.constant 1.06140542 : f32
    %396 = vector.broadcast %cst_121 : f32 to vector<16x64xf32>
    %397 = arith.mulf %396, %395 : vector<16x64xf32>
    %cst_122 = arith.constant -1.45315206 : f32
    %398 = vector.broadcast %cst_122 : f32 to vector<16x64xf32>
    %399 = arith.addf %397, %398 : vector<16x64xf32>
    %400 = arith.mulf %399, %395 : vector<16x64xf32>
    %cst_123 = arith.constant 1.42141378 : f32
    %401 = vector.broadcast %cst_123 : f32 to vector<16x64xf32>
    %402 = arith.addf %400, %401 : vector<16x64xf32>
    %403 = arith.mulf %402, %395 : vector<16x64xf32>
    %cst_124 = arith.constant -0.284496725 : f32
    %404 = vector.broadcast %cst_124 : f32 to vector<16x64xf32>
    %405 = arith.addf %403, %404 : vector<16x64xf32>
    %406 = arith.mulf %405, %395 : vector<16x64xf32>
    %cst_125 = arith.constant 0.254829586 : f32
    %407 = vector.broadcast %cst_125 : f32 to vector<16x64xf32>
    %408 = arith.addf %406, %407 : vector<16x64xf32>
    %409 = arith.mulf %408, %395 : vector<16x64xf32>
    %cst_126 = arith.constant 0.000000e+00 : f32
    %410 = vector.broadcast %cst_126 : f32 to vector<16x64xf32>
    %411 = arith.subf %410, %389 : vector<16x64xf32>
    %412 = arith.mulf %411, %389 : vector<16x64xf32>
    %413 = math.exp %412 : vector<16x64xf32>
    %414 = arith.mulf %409, %413 : vector<16x64xf32>
    %cst_127 = arith.constant 1.000000e+00 : f32
    %415 = vector.broadcast %cst_127 : f32 to vector<16x64xf32>
    %416 = arith.subf %415, %414 : vector<16x64xf32>
    %417 = arith.mulf %388, %416 : vector<16x64xf32>
    %cst_128 = arith.constant 1.000000e+00 : f32
    %418 = vector.broadcast %cst_128 : f32 to vector<16x64xf32>
    %419 = arith.addf %418, %417 : vector<16x64xf32>
    %420 = arith.mulf %381, %419 : vector<16x64xf32>
    %421 = arith.truncf %420 : vector<16x64xf32> to vector<16x64xbf16>
    %c1_129 = arith.constant 1 : index
    %c0_130 = arith.constant 0 : index
    %c0_131 = arith.constant 0 : index
    %422 = vector.load %arg5[%c1_129, %c0_130, %c0_131] : memref<2x64x32xbf16, #tpu.memory_space<vmem>>, vector<1x64x32xbf16>
    %423 = vector.shape_cast %422 : vector<1x64x32xbf16> to vector<64x32xbf16>
    %cst_132 = arith.constant dense<0.000000e+00> : vector<16x32xf32>
    %424 = tpu.matmul %421, %423, %cst_132 {dimension_numbers = #tpu.dot_dimension_numbers<[1], [0], [0], [1], [0, 0, 1, 1], [], []>} : vector<16x64xbf16>, vector<64x32xbf16>, vector<16x32xf32> -> vector<16x32xf32>
    %425 = vector.broadcast %245 : vector<1x32xf32> to vector<16x32xf32>
    %426 = arith.addf %424, %425 : vector<16x32xf32>
    %427 = arith.addf %373, %426 : vector<16x32xf32>
    %cst_133 = arith.constant dense<0.000000e+00> : vector<16xf32>
    %428 = vector.multi_reduction <add>, %427, %cst_133 [1] : vector<16x32xf32> to vector<16xf32>
    %429 = vector.shape_cast %428 : vector<16xf32> to vector<16x1xf32>
    %cst_134 = arith.constant 3.200000e+01 : f32
    %430 = vector.broadcast %cst_134 : f32 to vector<16x1xf32>
    %431 = arith.divf %429, %430 : vector<16x1xf32>
    %432 = vector.broadcast %431 : vector<16x1xf32> to vector<16x32xf32>
    %433 = arith.subf %427, %432 : vector<16x32xf32>
    %434 = arith.mulf %433, %433 : vector<16x32xf32>
    %cst_135 = arith.constant dense<0.000000e+00> : vector<16xf32>
    %435 = vector.multi_reduction <add>, %434, %cst_135 [1] : vector<16x32xf32> to vector<16xf32>
    %436 = vector.shape_cast %435 : vector<16xf32> to vector<16x1xf32>
    %cst_136 = arith.constant 3.200000e+01 : f32
    %437 = vector.broadcast %cst_136 : f32 to vector<16x1xf32>
    %438 = arith.divf %436, %437 : vector<16x1xf32>
    %cst_137 = arith.constant 9.99999996E-13 : f32
    %439 = vector.broadcast %cst_137 : f32 to vector<16x1xf32>
    %440 = arith.addf %438, %439 : vector<16x1xf32>
    %441 = math.rsqrt %440 : vector<16x1xf32>
    %442 = vector.broadcast %441 : vector<16x1xf32> to vector<16x32xf32>
    %443 = arith.mulf %433, %442 : vector<16x32xf32>
    %444 = vector.broadcast %246 : vector<1x32xf32> to vector<16x32xf32>
    %445 = arith.mulf %443, %444 : vector<16x32xf32>
    %446 = vector.broadcast %247 : vector<1x32xf32> to vector<16x32xf32>
    %447 = arith.addf %445, %446 : vector<16x32xf32>
    %448 = vector.extract_strided_slice %447 {offsets = [0, 0], sizes = [1, 32], strides = [1, 1]} : vector<16x32xf32> to vector<1x32xf32>
    %449 = vector.extract_strided_slice %447 {offsets = [8, 0], sizes = [1, 32], strides = [1, 1]} : vector<16x32xf32> to vector<1x32xf32>
    %450 = tpu.concatenate %448, %449 in 0 : vector<1x32xf32>, vector<1x32xf32> -> vector<2x32xf32>
    %c0_138 = arith.constant 0 : index
    %c0_139 = arith.constant 0 : index
    %451 = vector.load %arg7[%c0_138, %c0_139] : memref<32x64xbf16, #tpu.memory_space<vmem>>, vector<32x64xbf16>
    %452 = vector.extract_strided_slice %451 {offsets = [0, 0], sizes = [32, 32], strides = [1, 1]} : vector<32x64xbf16> to vector<32x32xbf16>
    %453 = vector.extract_strided_slice %451 {offsets = [0, 32], sizes = [32, 16], strides = [1, 1]} : vector<32x64xbf16> to vector<32x16xbf16>
    %454 = vector.extract_strided_slice %451 {offsets = [0, 48], sizes = [16, 16], strides = [1, 1]} : vector<32x64xbf16> to vector<16x16xbf16>
    %455 = arith.truncf %450 : vector<2x32xf32> to vector<2x32xbf16>
    %cst_140 = arith.constant dense<0.000000e+00> : vector<2x32xf32>
    %456 = tpu.matmul %455, %452, %cst_140 {dimension_numbers = #tpu.dot_dimension_numbers<[1], [0], [0], [1], [0, 0, 1, 1], [], []>} : vector<2x32xbf16>, vector<32x32xbf16>, vector<2x32xf32> -> vector<2x32xf32>
    %457 = vector.broadcast %4 : vector<1x32xf32> to vector<2x32xf32>
    %458 = arith.addf %456, %457 : vector<2x32xf32>
    %459 = math.tanh %458 : vector<2x32xf32>
    %460 = arith.truncf %459 : vector<2x32xf32> to vector<2x32xbf16>
    %cst_141 = arith.constant dense<0.000000e+00> : vector<2x16xf32>
    %461 = tpu.matmul %460, %453, %cst_141 {dimension_numbers = #tpu.dot_dimension_numbers<[1], [0], [0], [1], [0, 0, 1, 1], [], []>} : vector<2x32xbf16>, vector<32x16xbf16>, vector<2x16xf32> -> vector<2x16xf32>
    %462 = vector.broadcast %5 : vector<1x16xf32> to vector<2x16xf32>
    %463 = arith.addf %461, %462 : vector<2x16xf32>
    %cst_142 = arith.constant 5.000000e-01 : f32
    %464 = vector.broadcast %cst_142 : f32 to vector<2x16xf32>
    %465 = arith.mulf %464, %463 : vector<2x16xf32>
    %cst_143 = arith.constant 0.707106769 : f32
    %466 = vector.broadcast %cst_143 : f32 to vector<2x16xf32>
    %467 = arith.mulf %463, %466 : vector<2x16xf32>
    %cst_144 = arith.constant 0.000000e+00 : f32
    %468 = vector.broadcast %cst_144 : f32 to vector<2x16xf32>
    %469 = arith.cmpf oge, %467, %468 : vector<2x16xf32>
    %cst_145 = arith.constant 1.000000e+00 : f32
    %cst_146 = arith.constant -1.000000e+00 : f32
    %470 = vector.broadcast %cst_145 : f32 to vector<2x16xf32>
    %471 = vector.broadcast %cst_146 : f32 to vector<2x16xf32>
    %472 = arith.select %469, %470, %471 : vector<2x16xi1>, vector<2x16xf32>
    %473 = math.absf %467 : vector<2x16xf32>
    %cst_147 = arith.constant 0.327591091 : f32
    %474 = vector.broadcast %cst_147 : f32 to vector<2x16xf32>
    %475 = arith.mulf %474, %473 : vector<2x16xf32>
    %cst_148 = arith.constant 1.000000e+00 : f32
    %476 = vector.broadcast %cst_148 : f32 to vector<2x16xf32>
    %477 = arith.addf %476, %475 : vector<2x16xf32>
    %cst_149 = arith.constant 1.000000e+00 : f32
    %478 = vector.broadcast %cst_149 : f32 to vector<2x16xf32>
    %479 = arith.divf %478, %477 : vector<2x16xf32>
    %cst_150 = arith.constant 1.06140542 : f32
    %480 = vector.broadcast %cst_150 : f32 to vector<2x16xf32>
    %481 = arith.mulf %480, %479 : vector<2x16xf32>
    %cst_151 = arith.constant -1.45315206 : f32
    %482 = vector.broadcast %cst_151 : f32 to vector<2x16xf32>
    %483 = arith.addf %481, %482 : vector<2x16xf32>
    %484 = arith.mulf %483, %479 : vector<2x16xf32>
    %cst_152 = arith.constant 1.42141378 : f32
    %485 = vector.broadcast %cst_152 : f32 to vector<2x16xf32>
    %486 = arith.addf %484, %485 : vector<2x16xf32>
    %487 = arith.mulf %486, %479 : vector<2x16xf32>
    %cst_153 = arith.constant -0.284496725 : f32
    %488 = vector.broadcast %cst_153 : f32 to vector<2x16xf32>
    %489 = arith.addf %487, %488 : vector<2x16xf32>
    %490 = arith.mulf %489, %479 : vector<2x16xf32>
    %cst_154 = arith.constant 0.254829586 : f32
    %491 = vector.broadcast %cst_154 : f32 to vector<2x16xf32>
    %492 = arith.addf %490, %491 : vector<2x16xf32>
    %493 = arith.mulf %492, %479 : vector<2x16xf32>
    %cst_155 = arith.constant 0.000000e+00 : f32
    %494 = vector.broadcast %cst_155 : f32 to vector<2x16xf32>
    %495 = arith.subf %494, %473 : vector<2x16xf32>
    %496 = arith.mulf %495, %473 : vector<2x16xf32>
    %497 = math.exp %496 : vector<2x16xf32>
    %498 = arith.mulf %493, %497 : vector<2x16xf32>
    %cst_156 = arith.constant 1.000000e+00 : f32
    %499 = vector.broadcast %cst_156 : f32 to vector<2x16xf32>
    %500 = arith.subf %499, %498 : vector<2x16xf32>
    %501 = arith.mulf %472, %500 : vector<2x16xf32>
    %cst_157 = arith.constant 1.000000e+00 : f32
    %502 = vector.broadcast %cst_157 : f32 to vector<2x16xf32>
    %503 = arith.addf %502, %501 : vector<2x16xf32>
    %504 = arith.mulf %465, %503 : vector<2x16xf32>
    %505 = arith.truncf %504 : vector<2x16xf32> to vector<2x16xbf16>
    %cst_158 = arith.constant dense<0.000000e+00> : vector<2x16xf32>
    %506 = tpu.matmul %505, %454, %cst_158 {dimension_numbers = #tpu.dot_dimension_numbers<[1], [0], [0], [1], [0, 0, 1, 1], [], []>} : vector<2x16xbf16>, vector<16x16xbf16>, vector<2x16xf32> -> vector<2x16xf32>
    %507 = vector.broadcast %6 : vector<1x16xf32> to vector<2x16xf32>
    %508 = arith.addf %506, %507 : vector<2x16xf32>
    %509 = arith.mulf %508, %508 : vector<2x16xf32>
    %cst_159 = arith.constant dense<0.000000e+00> : vector<2xf32>
    %510 = vector.multi_reduction <add>, %509, %cst_159 [1] : vector<2x16xf32> to vector<2xf32>
    %511 = vector.shape_cast %510 : vector<2xf32> to vector<2x1xf32>
    %512 = math.sqrt %511 : vector<2x1xf32>
    %cst_160 = arith.constant 9.99999996E-13 : f32
    %513 = vector.broadcast %cst_160 : f32 to vector<2x1xf32>
    %514 = arith.maximumf %512, %513 : vector<2x1xf32>
    %515 = vector.broadcast %514 : vector<2x1xf32> to vector<2x16xf32>
    %516 = arith.divf %508, %515 : vector<2x16xf32>
    %c0_161 = arith.constant 0 : index
    %c0_162 = arith.constant 0 : index
    %517 = vector.load %arg9[%c0_161, %c0_162] : memref<2x16xf32, #tpu.memory_space<vmem>>, vector<2x16xf32>
    tpu.vector_store %arg9[%c0_161, %c0_162], %516 {strides = array<i32>} : memref<2x16xf32, #tpu.memory_space<vmem>>, vector<2x16xf32>,
    return
  }
}

</mosaic_0001>

<llo_original>
// kernel: path_bert_forward.1
$region0: #{path_bert_forward.1}
  #allocation0 [shape = 'u32[]', space=smem, size = 0x4, offset = 0x4, fixed_abs, tag = 'smem constant byte address 0x4 - core index']
  #allocation1 [shape = 'u32[72,128]{1,0:T(1,128)}', space=vmem, size = 0x9000, scoped, tag = 'internal scratch']
  %s0 = inlined_call_operand.vmem [shape: f32[16,32], index: 0, kind: input, shape index: {}]
  %s1 = inlined_call_operand.vmem [shape: f32[16,16], index: 1, kind: input, shape index: {}]
  %s2 = inlined_call_operand.vmem [shape: bf16[2,32,96], index: 2, kind: input, shape index: {}]
  %s3 = inlined_call_operand.vmem [shape: bf16[2,32,32], index: 3, kind: input, shape index: {}]
  %s4 = inlined_call_operand.vmem [shape: bf16[2,32,64], index: 4, kind: input, shape index: {}]
  %s5 = inlined_call_operand.vmem [shape: bf16[2,64,32], index: 5, kind: input, shape index: {}]
  %s6 = inlined_call_operand.vmem [shape: f32[2,8,96], index: 6, kind: input, shape index: {}]
  %s7 = inlined_call_operand.vmem [shape: bf16[32,64], index: 7, kind: input, shape index: {}]
  %s8 = inlined_call_operand.vmem [shape: f32[5,32], index: 8, kind: input, shape index: {}]
  %s9 = inlined_call_operand.hbm [shape: f32[2,16], index: 9, kind: output, shape index: {}]
  %s10 = sld [smem:[#allocation0]]
  $region46: #{path_bert_forward.1} parent=0
    _
  %s12 = ssub.s32 1, %s10
  %s13 = scalar_select 0, %s12, %s10
  $region1: #{path_bert_forward.1} parent=0
    #allocation2 [shape = 'u8[1024]{0}', space=vmem, size = 0x400, scoped, tag = 'output window, operand 0, single buffered']
    #allocation3 [shape = 's32[1]{0}', space=sflag, size = 0x4, scoped, tag = 'scoped memory for path_bert_forward.1']
    %14 = vsyncpa [#allocation3], 0
    // Predicated region
    $region2: #{path_bert_forward.1} parent=1 // pred_check
      _
    $region3: #{path_bert_forward.1} parent=1 // pred_check_branch
      %16 = sbr.rel (0) target = $region5
    $region4: #{path_bert_forward.1} parent=1 // pred_region
      _
    $region5: #{path_bert_forward.1} parent=1 // pred_fallthru
      _
    // Predicated region
    $region6: #{path_bert_forward.1} parent=1 // pred_check
      _
    $region7: #{path_bert_forward.1} parent=1 // pred_check_branch
      %18 = sbr.rel (0) target = $region9
    $region8: #{path_bert_forward.1} parent=1 // pred_region
      _
    $region9: #{path_bert_forward.1} parent=1 // pred_fallthru
      _
    // Predicated region
    $region10: #{path_bert_forward.1} parent=1 // pred_check
      _
    $region11: #{path_bert_forward.1} parent=1 // pred_check_branch
      %20 = sbr.rel (0) target = $region13
    $region12: #{path_bert_forward.1} parent=1 // pred_region
      _
    $region13: #{path_bert_forward.1} parent=1 // pred_fallthru
      _
    // Predicated region
    $region14: #{path_bert_forward.1} parent=1 // pred_check
      _
    $region15: #{path_bert_forward.1} parent=1 // pred_check_branch
      %22 = sbr.rel (0) target = $region17
    $region16: #{path_bert_forward.1} parent=1 // pred_region
      _
    $region17: #{path_bert_forward.1} parent=1 // pred_fallthru
      _
    // Predicated region
    $region18: #{path_bert_forward.1} parent=1 // pred_check
      _
    $region19: #{path_bert_forward.1} parent=1 // pred_check_branch
      %24 = sbr.rel (0) target = $region21
    $region20: #{path_bert_forward.1} parent=1 // pred_region
      _
    $region21: #{path_bert_forward.1} parent=1 // pred_fallthru
      _
    // Predicated region
    $region22: #{path_bert_forward.1} parent=1 // pred_check
      _
    $region23: #{path_bert_forward.1} parent=1 // pred_check_branch
      %26 = sbr.rel (0) target = $region25
    $region24: #{path_bert_forward.1} parent=1 // pred_region
      _
    $region25: #{path_bert_forward.1} parent=1 // pred_fallthru
      _
    // Predicated region
    $region26: #{path_bert_forward.1} parent=1 // pred_check
      _
    $region27: #{path_bert_forward.1} parent=1 // pred_check_branch
      %28 = sbr.rel (0) target = $region29
    $region28: #{path_bert_forward.1} parent=1 // pred_region
      _
    $region29: #{path_bert_forward.1} parent=1 // pred_fallthru
      _
    // Predicated region
    $region30: #{path_bert_forward.1} parent=1 // pred_check
      _
    $region31: #{path_bert_forward.1} parent=1 // pred_check_branch
      %30 = sbr.rel (0) target = $region33
    $region32: #{path_bert_forward.1} parent=1 // pred_region
      _
    $region33: #{path_bert_forward.1} parent=1 // pred_fallthru
      _
    // Predicated region
    $region34: #{path_bert_forward.1} parent=1 // pred_check
      _
    $region35: #{path_bert_forward.1} parent=1 // pred_check_branch
      %32 = sbr.rel (0) target = $region37
    $region36: #{path_bert_forward.1} parent=1 // pred_region
      _
    $region37: #{path_bert_forward.1} parent=1 // pred_fallthru
      _
    %v34 = vld [vmem:[%s1] sm:$0xff]
    %v35 = vld [vmem:[%s1 + $0x8] sm:$0xff]
    %v36 = vld [vmem:[%s8] sm:$0x1f]
    %v37 = vld [vmem:[%s0] sm:$0xff]
    %v38 = vld [vmem:[%s0 + $0x8] sm:$0xff]
    %vm39 = vcmask 261120
    %v40 = vsel %vm39, %v37, 0.0
    %41 = vadd.xlane.f32.xlu0 %v40
    %v42 = vpop.xlane.xlu0 %41
    %v43 = vsel %vm39, %v38, 0.0
    %44 = vadd.xlane.f32.xlu0 %v43
    %v45 = vpop.xlane.xlu0 %44
    %v46 = vrcp.pop 32.0
    %v47 = vmul.f32 32.0, %v46
    %v48 = vsub.f32 1.0, %v47
    %v49 = vmul.f32 %v46, %v48
    %v50 = vadd.f32 %v46, %v49
    %vm51 = vweird.f32 %v46
    %v52 = vsel %vm51, %v46, %v50
    %v53 = vmul.f32 %v42, %v52
    %v54 = vmul.f32 %v45, %v52
    %v55 = vsub.f32 %v37, %v53
    %v56 = vsub.f32 %v38, %v54
    %v57 = vmul.f32 %v55, %v55
    %v58 = vmul.f32 %v56, %v56
    %v59 = vsel %vm39, %v57, 0.0
    %60 = vadd.xlane.f32.xlu0 %v59
    %v61 = vpop.xlane.xlu0 %60
    %v62 = vsel %vm39, %v58, 0.0
    %63 = vadd.xlane.f32.xlu0 %v62
    %v64 = vpop.xlane.xlu0 %63
    %v65 = vmul.f32 %v61, %v52
    %v66 = vmul.f32 %v64, %v52
    %v67 = vadd.f32 %v65, 1e-12
    %v68 = vadd.f32 %v66, 1e-12
    %v69 = vrsqrt.pop %v67
    %v70 = vmul.f32 %v69, %v67
    %v71 = vmul.f32 %v70, %v69
    %v72 = vmul.f32 0.5, %v71
    %v73 = vsub.f32 1.5, %v72
    %v74 = vmul.f32 %v69, %v73
    %vm75 = vweird.f32 %v67
    %vm76 = vweird.f32 %v69
    %vm77 = vmor %vm75, %vm76
    %v78 = vsel %vm77, %v69, %v74
    %v79 = vrsqrt.pop %v68
    %v80 = vmul.f32 %v79, %v68
    %v81 = vmul.f32 %v80, %v79
    %v82 = vmul.f32 0.5, %v81
    %v83 = vsub.f32 1.5, %v82
    %v84 = vmul.f32 %v79, %v83
    %vm85 = vweird.f32 %v68
    %vm86 = vweird.f32 %v79
    %vm87 = vmor %vm85, %vm86
    %v88 = vsel %vm87, %v79, %v84
    %v89 = vmul.f32 %v55, %v78
    %v90 = vmul.f32 %v56, %v88
    %v91 = vperm.slane %v36, 0
    %v92 = vmul.f32 %v89, %v91
    %v93 = vmul.f32 %v90, %v91
    %v94 = vperm.slane %v36, 1
    %v95 = vadd.f32 %v92, %v94
    %v96 = vadd.f32 %v93, %v94
    %v97 = vld [vmem:[%s6] sm:$0xff]
    %v98 = vpack.c.bf16 %v96, %v95
    %v99 = vld [vmem:[%s2] sm:$0xf]
    %v100 = vld [vmem:[%s2 + $0x4] sm:$0xf]
    %v101 = vld [vmem:[%s2 + $0x8] sm:$0xf]
    %v102 = vld [vmem:[%s2 + $0xc] sm:$0xf]
    %v103 = vperm.slane %v97, 0
    %v108 = vunpack.c.l.b16 %v99
    %v109 = vunpack.c.l.b16 %v100
    %v110 = vunpack.c.l.b16 %v101
    %v111 = vunpack.c.l.b16 %v102
    %v112 = vpack.c.b16 %v109, %v108
    %v113 = vpack.c.b16 %v111, %v110
    %v117 = vsel %vm39, %v98, 0
    %119 = vmatpush.bf16.msra.mxu0 0
    %120 = vmatpush.bf16.msra.mxu0 0
    %121 = vmatpush.bf16.msra.mxu0 0
    %122 = vmatpush.bf16.msra.mxu0 0
    %123 = vmatpush.bf16.msra.mxu0 0
    %124 = vmatpush.bf16.msra.mxu0 0
    %125 = vmatpush.bf16.msra.mxu0 %v113
    %126 = vmatpush.bf16.msra.mxu0 %v112
    %127 = vmatmul.bf16.gmra.mxu0 %v117
    %v128 = vpop.f32.mrf.mxu0
    %v129 = vadd.f32 %v103, %v128
    %v130 = vpop.f32.mrf.mxu0
    %v131 = vadd.f32 %v103, %v130
    %132 = vdwg.mxu0
    %135 = vrot.lane.b32.xlu0 %v129, 96
    %v136 = vpop.permute.xlu0 %135
    %137 = vrot.lane.b32.xlu0 %v131, 96
    %v138 = vpop.permute.xlu0 %137
    %141 = vxpose.xlu0.b32.start [1/16] %v136, 128
    %142 = vxpose.xlu0.b32.cont [2/16] %v138, 128
    %143 = vxpose.xlu0.b32.cont [3/16] 0.0, 128
    %144 = vxpose.xlu0.b32.cont [4/16] 0.0, 128
    %145 = vxpose.xlu0.b32.cont [5/16] 0.0, 128
    %146 = vxpose.xlu0.b32.cont [6/16] 0.0, 128
    %147 = vxpose.xlu0.b32.cont [7/16] 0.0, 128
    %148 = vxpose.xlu0.b32.cont [8/16] 0.0, 128
    %149 = vxpose.xlu0.b32.cont [9/16] 0.0, 128
    %150 = vxpose.xlu0.b32.cont [10/16] 0.0, 128
    %151 = vxpose.xlu0.b32.cont [11/16] 0.0, 128
    %152 = vxpose.xlu0.b32.cont [12/16] 0.0, 128
    %153 = vxpose.xlu0.b32.cont [13/16] 0.0, 128
    %154 = vxpose.xlu0.b32.cont [14/16] 0.0, 128
    %155 = vxpose.xlu0.b32.cont [15/16] 0.0, 128
    %156 = vxpose.xlu0.b32.end [16/16] 0.0, 128
    %v157 = vpop.trf.xlu0
    %v158 = vpop.trf.xlu0
    %v159 = vpop.trf.xlu0
    %v160 = vpop.trf.xlu0
    %v161 = vpop.trf.xlu0
    %v162 = vpop.trf.xlu0
    %v163 = vpop.trf.xlu0
    %v164 = vpop.trf.xlu0
    %v165 = vpop.trf.xlu0
    %v166 = vpop.trf.xlu0
    %v167 = vpop.trf.xlu0
    %v168 = vpop.trf.xlu0
    %v169 = vpop.trf.xlu0
    %v170 = vpop.trf.xlu0
    %v171 = vpop.trf.xlu0
    %v172 = vpop.trf.xlu0
    %v173 = vpack.c.bf16 %v131, %v129
    %v174 = vpack.c.bf16 %v157, %v157
    %vm175 = vcmask 64512
    %v177 = vsel %vm175, %v173, 0
    %vm179 = vcmask 1043456
    %v181 = vsel %vm179, %v174, 0
    %183 = vmatpush.bf16.msra.mxu0 0
    %184 = vmatpush.bf16.msra.mxu0 0
    %185 = vmatpush.bf16.msra.mxu0 0
    %186 = vmatpush.bf16.msra.mxu0 0
    %187 = vmatpush.bf16.msra.mxu0 0
    %188 = vmatpush.bf16.msra.mxu0 0
    %189 = vmatpush.bf16.msra.mxu0 0
    %190 = vmatpush.bf16.msra.mxu0 %v181
    %191 = vmatmul.bf16.gmra.mxu0 %v177
    %v192 = vpop.f32.mrf.mxu0
    %v193 = vadd.f32 0.0, %v192
    %v194 = vpop.f32.mrf.mxu0
    %v195 = vadd.f32 0.0, %v194
    %196 = vdwg.mxu0
    %v197 = vmul.f32 %v193, 0.35355338
    %v198 = vmul.f32 %v195, 0.35355338
    %v199 = vadd.f32 %v197, %v34
    %v200 = vadd.f32 %v198, %v35
    %vm201 = vcmask 130048
    %v202 = vsel %vm201, %v199, -inf
    %203 = vmax.xlane.f32.xlu0 %v202
    %v204 = vpop.xlane.xlu0 %203
    %v205 = vsel %vm201, %v200, -inf
    %206 = vmax.xlane.f32.xlu0 %v205
    %v207 = vpop.xlane.xlu0 %206
    %v208 = vsub.f32 %v199, %v204
    %v209 = vsub.f32 %v200, %v207
    %v210 = vmul.f32 %v208, 1.442695
    %v211 = vpow.pop %v210
    %v212 = vmul.f32 %v209, 1.442695
    %v213 = vpow.pop %v212
    %v214 = vsel %vm201, %v211, 0.0
    %215 = vadd.xlane.f32.xlu0 %v214
    %v216 = vpop.xlane.xlu0 %215
    %v217 = vsel %vm201, %v213, 0.0
    %218 = vadd.xlane.f32.xlu0 %v217
    %v219 = vpop.xlane.xlu0 %218
    %v220 = vrcp.pop %v216
    %v221 = vrcp.pop %v219
    %v222 = vmul.f32 %v211, %v220
    %v223 = vmul.f32 %v213, %v221
    %v224 = vpack.c.bf16 %v223, %v222
    %226 = vrot.lane.b32.xlu0 %v173, 64
    %v227 = vpop.permute.xlu0 %226
    %v230 = vsel %vm201, %v224, 0
    %232 = vmatpush.bf16.msra.mxu0 0
    %233 = vmatpush.bf16.msra.mxu0 0
    %234 = vmatpush.bf16.msra.mxu0 0
    %235 = vmatpush.bf16.msra.mxu0 0
    %236 = vmatpush.bf16.msra.mxu0 0
    %237 = vmatpush.bf16.msra.mxu0 0
    %238 = vmatpush.bf16.msra.mxu0 0
    %239 = vmatpush.bf16.msra.mxu0 %v227
    %240 = vmatmul.bf16.gmra.mxu0 %v230
    %v241 = vpop.f32.mrf.mxu0
    %v242 = vadd.f32 0.0, %v241
    %v243 = vpop.f32.mrf.mxu0
    %v244 = vadd.f32 0.0, %v243
    %245 = vdwg.mxu0
    %v246 = vpack.c.bf16 %v158, %v158
    %247 = vrot.lane.b32.xlu0 %v173, 120
    %v248 = vpop.permute.xlu0 %247
    %v250 = vsel %vm175, %v248, 0
    %v253 = vsel %vm179, %v246, 0
    %255 = vmatpush.bf16.msra.mxu0 0
    %256 = vmatpush.bf16.msra.mxu0 0
    %257 = vmatpush.bf16.msra.mxu0 0
    %258 = vmatpush.bf16.msra.mxu0 0
    %259 = vmatpush.bf16.msra.mxu0 0
    %260 = vmatpush.bf16.msra.mxu0 0
    %261 = vmatpush.bf16.msra.mxu0 0
    %262 = vmatpush.bf16.msra.mxu0 %v253
    %263 = vmatmul.bf16.gmra.mxu0 %v250
    %v264 = vpop.f32.mrf.mxu0
    %v265 = vadd.f32 0.0, %v264
    %v266 = vpop.f32.mrf.mxu0
    %v267 = vadd.f32 0.0, %v266
    %268 = vdwg.mxu0
    %v269 = vmul.f32 %v265, 0.35355338
    %v270 = vmul.f32 %v267, 0.35355338
    %v271 = vadd.f32 %v269, %v34
    %v272 = vadd.f32 %v270, %v35
    %v273 = vsel %vm201, %v271, -inf
    %274 = vmax.xlane.f32.xlu0 %v273
    %v275 = vpop.xlane.xlu0 %274
    %v276 = vsel %vm201, %v272, -inf
    %277 = vmax.xlane.f32.xlu0 %v276
    %v278 = vpop.xlane.xlu0 %277
    %v279 = vsub.f32 %v271, %v275
    %v280 = vsub.f32 %v272, %v278
    %v281 = vmul.f32 %v279, 1.442695
    %v282 = vpow.pop %v281
    %v283 = vmul.f32 %v280, 1.442695
    %v284 = vpow.pop %v283
    %v285 = vsel %vm201, %v282, 0.0
    %286 = vadd.xlane.f32.xlu0 %v285
    %v287 = vpop.xlane.xlu0 %286
    %v288 = vsel %vm201, %v284, 0.0
    %289 = vadd.xlane.f32.xlu0 %v288
    %v290 = vpop.xlane.xlu0 %289
    %v291 = vrcp.pop %v287
    %v292 = vrcp.pop %v290
    %v293 = vmul.f32 %v282, %v291
    %v294 = vmul.f32 %v284, %v292
    %v295 = vpack.c.bf16 %v294, %v293
    %296 = vrot.lane.b32.xlu0 %v173, 56
    %v297 = vpop.permute.xlu0 %296
    %v300 = vsel %vm201, %v295, 0
    %302 = vmatpush.bf16.msra.mxu0 0
    %303 = vmatpush.bf16.msra.mxu0 0
    %304 = vmatpush.bf16.msra.mxu0 0
    %305 = vmatpush.bf16.msra.mxu0 0
    %306 = vmatpush.bf16.msra.mxu0 0
    %307 = vmatpush.bf16.msra.mxu0 0
    %308 = vmatpush.bf16.msra.mxu0 0
    %309 = vmatpush.bf16.msra.mxu0 %v297
    %310 = vmatmul.bf16.gmra.mxu0 %v300
    %v311 = vpop.f32.mrf.mxu0
    %v312 = vadd.f32 0.0, %v311
    %v313 = vpop.f32.mrf.mxu0
    %v314 = vadd.f32 0.0, %v313
    %315 = vdwg.mxu0
    %v316 = vpack.c.bf16 %v159, %v159
    %317 = vrot.lane.b32.xlu0 %v173, 112
    %v318 = vpop.permute.xlu0 %317
    %v320 = vsel %vm175, %v318, 0
    %v323 = vsel %vm179, %v316, 0
    %325 = vmatpush.bf16.msra.mxu0 0
    %326 = vmatpush.bf16.msra.mxu0 0
    %327 = vmatpush.bf16.msra.mxu0 0
    %328 = vmatpush.bf16.msra.mxu0 0
    %329 = vmatpush.bf16.msra.mxu0 0
    %330 = vmatpush.bf16.msra.mxu0 0
    %331 = vmatpush.bf16.msra.mxu0 0
    %332 = vmatpush.bf16.msra.mxu0 %v323
    %333 = vmatmul.bf16.gmra.mxu0 %v320
    %v334 = vpop.f32.mrf.mxu0
    %v335 = vadd.f32 0.0, %v334
    %v336 = vpop.f32.mrf.mxu0
    %v337 = vadd.f32 0.0, %v336
    %338 = vdwg.mxu0
    %v339 = vmul.f32 %v335, 0.35355338
    %v340 = vmul.f32 %v337, 0.35355338
    %v341 = vadd.f32 %v339, %v34
    %v342 = vadd.f32 %v340, %v35
    %v343 = vsel %vm201, %v341, -inf
    %344 = vmax.xlane.f32.xlu0 %v343
    %v345 = vpop.xlane.xlu0 %344
    %v346 = vsel %vm201, %v342, -inf
    %347 = vmax.xlane.f32.xlu0 %v346
    %v348 = vpop.xlane.xlu0 %347
    %v349 = vsub.f32 %v341, %v345
    %v350 = vsub.f32 %v342, %v348
    %v351 = vmul.f32 %v349, 1.442695
    %v352 = vpow.pop %v351
    %v353 = vmul.f32 %v350, 1.442695
    %v354 = vpow.pop %v353
    %v355 = vsel %vm201, %v352, 0.0
    %356 = vadd.xlane.f32.xlu0 %v355
    %v357 = vpop.xlane.xlu0 %356
    %v358 = vsel %vm201, %v354, 0.0
    %359 = vadd.xlane.f32.xlu0 %v358
    %v360 = vpop.xlane.xlu0 %359
    %v361 = vrcp.pop %v357
    %v362 = vrcp.pop %v360
    %v363 = vmul.f32 %v352, %v361
    %v364 = vmul.f32 %v354, %v362
    %v365 = vpack.c.bf16 %v364, %v363
    %366 = vrot.lane.b32.xlu0 %v173, 48
    %v367 = vpop.permute.xlu0 %366
    %v370 = vsel %vm201, %v365, 0
    %372 = vmatpush.bf16.msra.mxu0 0
    %373 = vmatpush.bf16.msra.mxu0 0
    %374 = vmatpush.bf16.msra.mxu0 0
    %375 = vmatpush.bf16.msra.mxu0 0
    %376 = vmatpush.bf16.msra.mxu0 0
    %377 = vmatpush.bf16.msra.mxu0 0
    %378 = vmatpush.bf16.msra.mxu0 0
    %379 = vmatpush.bf16.msra.mxu0 %v367
    %380 = vmatmul.bf16.gmra.mxu0 %v370
    %v381 = vpop.f32.mrf.mxu0
    %v382 = vadd.f32 0.0, %v381
    %v383 = vpop.f32.mrf.mxu0
    %v384 = vadd.f32 0.0, %v383
    %385 = vdwg.mxu0
    %v386 = vpack.c.bf16 %v160, %v160
    %387 = vrot.lane.b32.xlu0 %v173, 104
    %v388 = vpop.permute.xlu0 %387
    %v390 = vsel %vm175, %v388, 0
    %v393 = vsel %vm179, %v386, 0
    %395 = vmatpush.bf16.msra.mxu0 0
    %396 = vmatpush.bf16.msra.mxu0 0
    %397 = vmatpush.bf16.msra.mxu0 0
    %398 = vmatpush.bf16.msra.mxu0 0
    %399 = vmatpush.bf16.msra.mxu0 0
    %400 = vmatpush.bf16.msra.mxu0 0
    %401 = vmatpush.bf16.msra.mxu0 0
    %402 = vmatpush.bf16.msra.mxu0 %v393
    %403 = vmatmul.bf16.gmra.mxu0 %v390
    %v404 = vpop.f32.mrf.mxu0
    %v405 = vadd.f32 0.0, %v404
    %v406 = vpop.f32.mrf.mxu0
    %v407 = vadd.f32 0.0, %v406
    %408 = vdwg.mxu0
    %v409 = vmul.f32 %v405, 0.35355338
    %v410 = vmul.f32 %v407, 0.35355338
    %v411 = vadd.f32 %v409, %v34
    %v412 = vadd.f32 %v410, %v35
    %v413 = vsel %vm201, %v411, -inf
    %414 = vmax.xlane.f32.xlu0 %v413
    %v415 = vpop.xlane.xlu0 %414
    %v416 = vsel %vm201, %v412, -inf
    %417 = vmax.xlane.f32.xlu0 %v416
    %v418 = vpop.xlane.xlu0 %417
    %v419 = vsub.f32 %v411, %v415
    %v420 = vsub.f32 %v412, %v418
    %v421 = vmul.f32 %v419, 1.442695
    %v422 = vpow.pop %v421
    %v423 = vmul.f32 %v420, 1.442695
    %v424 = vpow.pop %v423
    %v425 = vsel %vm201, %v422, 0.0
    %426 = vadd.xlane.f32.xlu0 %v425
    %v427 = vpop.xlane.xlu0 %426
    %v428 = vsel %vm201, %v424, 0.0
    %429 = vadd.xlane.f32.xlu0 %v428
    %v430 = vpop.xlane.xlu0 %429
    %v431 = vrcp.pop %v427
    %v432 = vrcp.pop %v430
    %v433 = vmul.f32 %v422, %v431
    %v434 = vmul.f32 %v424, %v432
    %v435 = vpack.c.bf16 %v434, %v433
    %436 = vrot.lane.b32.xlu0 %v173, 40
    %v437 = vpop.permute.xlu0 %436
    %v440 = vsel %vm201, %v435, 0
    %442 = vmatpush.bf16.msra.mxu0 0
    %443 = vmatpush.bf16.msra.mxu0 0
    %444 = vmatpush.bf16.msra.mxu0 0
    %445 = vmatpush.bf16.msra.mxu0 0
    %446 = vmatpush.bf16.msra.mxu0 0
    %447 = vmatpush.bf16.msra.mxu0 0
    %448 = vmatpush.bf16.msra.mxu0 0
    %449 = vmatpush.bf16.msra.mxu0 %v437
    %450 = vmatmul.bf16.gmra.mxu0 %v440
    %v451 = vpop.f32.mrf.mxu0
    %v452 = vadd.f32 0.0, %v451
    %v453 = vpop.f32.mrf.mxu0
    %v454 = vadd.f32 0.0, %v453
    %455 = vdwg.mxu0
    %458 = vrot.lane.b32.xlu0 %v312, 8
    %v459 = vpop.permute.xlu0 %458
    %460 = vrot.lane.b32.xlu0 %v314, 8
    %v461 = vpop.permute.xlu0 %460
    %466 = vrot.lane.b32.xlu0 %v382, 16
    %v467 = vpop.permute.xlu0 %466
    %468 = vrot.lane.b32.xlu0 %v384, 16
    %v469 = vpop.permute.xlu0 %468
    %474 = vrot.lane.b32.xlu0 %v452, 24
    %v475 = vpop.permute.xlu0 %474
    %476 = vrot.lane.b32.xlu0 %v454, 24
    %v477 = vpop.permute.xlu0 %476
    %v480 = vsel %vm175, %v242, %v459
    %v481 = vsel %vm175, %v244, %v461
    %v482 = vsel %vm201, %v480, %v467
    %v483 = vsel %vm201, %v481, %v469
    %vm484 = vcmask 195584
    %v485 = vsel %vm484, %v482, %v475
    %v486 = vsel %vm484, %v483, %v477
    %v487 = vpack.c.bf16 %v486, %v485
    %v488 = vld [vmem:[%s3] sm:$0xf]
    %v489 = vld [vmem:[%s3 + $0x4] sm:$0xf]
    %v490 = vld [vmem:[%s3 + $0x8] sm:$0xf]
    %v491 = vld [vmem:[%s3 + $0xc] sm:$0xf]
    %v496 = vunpack.c.l.b16 %v488
    %v497 = vunpack.c.l.b16 %v489
    %v498 = vunpack.c.l.b16 %v490
    %v499 = vunpack.c.l.b16 %v491
    %v500 = vpack.c.b16 %v497, %v496
    %v501 = vpack.c.b16 %v499, %v498
    %v505 = vsel %vm39, %v487, 0
    %507 = vmatpush.bf16.msra.mxu0 0
    %508 = vmatpush.bf16.msra.mxu0 0
    %509 = vmatpush.bf16.msra.mxu0 0
    %510 = vmatpush.bf16.msra.mxu0 0
    %511 = vmatpush.bf16.msra.mxu0 0
    %512 = vmatpush.bf16.msra.mxu0 0
    %513 = vmatpush.bf16.msra.mxu0 %v501
    %514 = vmatpush.bf16.msra.mxu0 %v500
    %515 = vmatmul.bf16.gmra.mxu0 %v505
    %v516 = vpop.f32.mrf.mxu0
    %v517 = vadd.f32 0.0, %v516
    %v518 = vpop.f32.mrf.mxu0
    %v519 = vadd.f32 0.0, %v518
    %520 = vdwg.mxu0
    %v521 = vadd.f32 %v95, %v517
    %v522 = vadd.f32 %v96, %v519
    %v523 = vperm.slane %v97, 1
    %v524 = vadd.f32 %v521, %v523
    %v525 = vadd.f32 %v522, %v523
    %v526 = vsel %vm39, %v524, 0.0
    %527 = vadd.xlane.f32.xlu0 %v526
    %v528 = vpop.xlane.xlu0 %527
    %v529 = vsel %vm39, %v525, 0.0
    %530 = vadd.xlane.f32.xlu0 %v529
    %v531 = vpop.xlane.xlu0 %530
    %v532 = vmul.f32 %v528, %v52
    %v533 = vmul.f32 %v531, %v52
    %v534 = vsub.f32 %v524, %v532
    %v535 = vsub.f32 %v525, %v533
    %v536 = vmul.f32 %v534, %v534
    %v537 = vmul.f32 %v535, %v535
    %v538 = vsel %vm39, %v536, 0.0
    %539 = vadd.xlane.f32.xlu0 %v538
    %v540 = vpop.xlane.xlu0 %539
    %v541 = vsel %vm39, %v537, 0.0
    %542 = vadd.xlane.f32.xlu0 %v541
    %v543 = vpop.xlane.xlu0 %542
    %v544 = vmul.f32 %v540, %v52
    %v545 = vmul.f32 %v543, %v52
    %v546 = vadd.f32 %v544, 1e-12
    %v547 = vadd.f32 %v545, 1e-12
    %v548 = vrsqrt.pop %v546
    %v549 = vmul.f32 %v548, %v546
    %v550 = vmul.f32 %v549, %v548
    %v551 = vmul.f32 0.5, %v550
    %v552 = vsub.f32 1.5, %v551
    %v553 = vmul.f32 %v548, %v552
    %vm554 = vweird.f32 %v546
    %vm555 = vweird.f32 %v548
    %vm556 = vmor %vm554, %vm555
    %v557 = vsel %vm556, %v548, %v553
    %v558 = vrsqrt.pop %v547
    %v559 = vmul.f32 %v558, %v547
    %v560 = vmul.f32 %v559, %v558
    %v561 = vmul.f32 0.5, %v560
    %v562 = vsub.f32 1.5, %v561
    %v563 = vmul.f32 %v558, %v562
    %vm564 = vweird.f32 %v547
    %vm565 = vweird.f32 %v558
    %vm566 = vmor %vm564, %vm565
    %v567 = vsel %vm566, %v558, %v563
    %v568 = vmul.f32 %v534, %v557
    %v569 = vmul.f32 %v535, %v567
    %v570 = vperm.slane %v97, 2
    %v571 = vmul.f32 %v568, %v570
    %v572 = vmul.f32 %v569, %v570
    %v573 = vperm.slane %v97, 3
    %v574 = vadd.f32 %v571, %v573
    %v575 = vadd.f32 %v572, %v573
    %v576 = vpack.c.bf16 %v575, %v574
    %v577 = vld [vmem:[%s4] sm:$0xf]
    %v578 = vld [vmem:[%s4 + $0x4] sm:$0xf]
    %v579 = vld [vmem:[%s4 + $0x8] sm:$0xf]
    %v580 = vld [vmem:[%s4 + $0xc] sm:$0xf]
    %v581 = vperm.slane %v97, 4
    %v586 = vunpack.c.l.b16 %v577
    %v587 = vunpack.c.l.b16 %v578
    %v588 = vunpack.c.l.b16 %v579
    %v589 = vunpack.c.l.b16 %v580
    %v590 = vpack.c.b16 %v587, %v586
    %v591 = vpack.c.b16 %v589, %v588
    %v595 = vsel %vm39, %v576, 0
    %597 = vmatpush.bf16.msra.mxu0 0
    %598 = vmatpush.bf16.msra.mxu0 0
    %599 = vmatpush.bf16.msra.mxu0 0
    %600 = vmatpush.bf16.msra.mxu0 0
    %601 = vmatpush.bf16.msra.mxu0 0
    %602 = vmatpush.bf16.msra.mxu0 0
    %603 = vmatpush.bf16.msra.mxu0 %v591
    %604 = vmatpush.bf16.msra.mxu0 %v590
    %605 = vmatmul.bf16.gmra.mxu0 %v595
    %v606 = vpop.f32.mrf.mxu0
    %v607 = vadd.f32 %v581, %v606
    %v608 = vpop.f32.mrf.mxu0
    %v609 = vadd.f32 %v581, %v608
    %610 = vdwg.mxu0
    %v611 = vmul.f32 %v607, 0.5
    %v612 = vmul.f32 %v609, 0.5
    %v613 = vmul.f32 %v607, 0.70710677
    %v614 = vmul.f32 %v609, 0.70710677
    %vm615 = vcmp.ge.f32.partialorder %v613, 0.0
    %vm616 = vcmp.ge.f32.partialorder %v614, 0.0
    %v617 = vsel %vm615, 1.0, -1.0
    %v618 = vsel %vm616, 1.0, -1.0
    %v619 = vand.u32 2147483647, %v613
    %v620 = vand.u32 2147483647, %v614
    %v621 = vmul.f32 %v619, 0.3275911
    %v622 = vmul.f32 %v620, 0.3275911
    %v623 = vadd.f32 %v621, 1.0
    %v624 = vadd.f32 %v622, 1.0
    %v625 = vrcp.pop %v623
    %v626 = vmul.f32 %v623, %v625
    %v627 = vsub.f32 1.0, %v626
    %v628 = vmul.f32 %v625, %v627
    %v629 = vadd.f32 %v625, %v628
    %vm630 = vweird.f32 %v623
    %vm631 = vweird.f32 %v625
    %vm632 = vmor %vm630, %vm631
    %v633 = vsel %vm632, %v625, %v629
    %v634 = vand.u32 2147483647, %v623
    %vm635 = vcmp.eq.f32.partialorder %v634, 8.507059e+37
    %v636 = vand.u32 %v623, 2147483648
    %v637 = vor.u32 1.1754944e-38, %v636
    %v638 = vsel %vm635, %v637, %v633
    %v639 = vmul.f32 1.0, %v638
    %v640 = vrcp.pop %v624
    %v641 = vmul.f32 %v624, %v640
    %v642 = vsub.f32 1.0, %v641
    %v643 = vmul.f32 %v640, %v642
    %v644 = vadd.f32 %v640, %v643
    %vm645 = vweird.f32 %v624
    %vm646 = vweird.f32 %v640
    %vm647 = vmor %vm645, %vm646
    %v648 = vsel %vm647, %v640, %v644
    %v649 = vand.u32 2147483647, %v624
    %vm650 = vcmp.eq.f32.partialorder %v649, 8.507059e+37
    %v651 = vand.u32 %v624, 2147483648
    %v652 = vor.u32 1.1754944e-38, %v651
    %v653 = vsel %vm650, %v652, %v648
    %v654 = vmul.f32 1.0, %v653
    %v655 = vmul.f32 %v639, 1.0614054
    %v656 = vmul.f32 %v654, 1.0614054
    %v657 = vadd.f32 %v655, -1.4531521
    %v658 = vadd.f32 %v656, -1.4531521
    %v659 = vmul.f32 %v657, %v639
    %v660 = vmul.f32 %v658, %v654
    %v661 = vadd.f32 %v659, 1.4214138
    %v662 = vadd.f32 %v660, 1.4214138
    %v663 = vmul.f32 %v661, %v639
    %v664 = vmul.f32 %v662, %v654
    %v665 = vadd.f32 %v663, -0.28449672
    %v666 = vadd.f32 %v664, -0.28449672
    %v667 = vmul.f32 %v665, %v639
    %v668 = vmul.f32 %v666, %v654
    %v669 = vadd.f32 %v667, 0.2548296
    %v670 = vadd.f32 %v668, 0.2548296
    %v671 = vmul.f32 %v669, %v639
    %v672 = vmul.f32 %v670, %v654
    %v673 = vsub.f32 0.0, %v619
    %v674 = vsub.f32 0.0, %v620
    %v675 = vmul.f32 %v673, %v619
    %v676 = vmul.f32 %v674, %v620
    %v677 = vmul.f32 %v675, 1.442695
    %v678 = vpow.pop %v677
    %v679 = vmul.f32 %v676, 1.442695
    %v680 = vpow.pop %v679
    %v681 = vmul.f32 %v671, %v678
    %v682 = vmul.f32 %v672, %v680
    %v683 = vsub.f32 1.0, %v681
    %v684 = vsub.f32 1.0, %v682
    %v685 = vmul.f32 %v617, %v683
    %v686 = vmul.f32 %v618, %v684
    %v687 = vadd.f32 %v685, 1.0
    %v688 = vadd.f32 %v686, 1.0
    %v689 = vmul.f32 %v611, %v687
    %v690 = vmul.f32 %v612, %v688
    %v691 = vpack.c.bf16 %v690, %v689
    %v692 = vld [vmem:[%s5] sm:$0xf]
    %v693 = vld [vmem:[%s5 + $0x4] sm:$0xf]
    %v694 = vld [vmem:[%s5 + $0x8] sm:$0xf]
    %v695 = vld [vmem:[%s5 + $0xc] sm:$0xf]
    %v696 = vld [vmem:[%s5 + $0x10] sm:$0xf]
    %v697 = vld [vmem:[%s5 + $0x14] sm:$0xf]
    %v698 = vld [vmem:[%s5 + $0x18] sm:$0xf]
    %v699 = vld [vmem:[%s5 + $0x1c] sm:$0xf]
    %v700 = vperm.slane %v97, 5
    %v709 = vunpack.c.l.b16 %v692
    %v710 = vunpack.c.l.b16 %v693
    %v711 = vunpack.c.l.b16 %v694
    %v712 = vunpack.c.l.b16 %v695
    %v713 = vunpack.c.l.b16 %v696
    %v714 = vunpack.c.l.b16 %v697
    %v715 = vunpack.c.l.b16 %v698
    %v716 = vunpack.c.l.b16 %v699
    %v717 = vpack.c.b16 %v710, %v709
    %v718 = vpack.c.b16 %v712, %v711
    %v719 = vpack.c.b16 %v714, %v713
    %v720 = vpack.c.b16 %v716, %v715
    %vm725 = vcmask 523264
    %v727 = vsel %vm725, %v691, 0
    %729 = vmatpush.bf16.msra.mxu0 0
    %730 = vmatpush.bf16.msra.mxu0 0
    %731 = vmatpush.bf16.msra.mxu0 0
    %732 = vmatpush.bf16.msra.mxu0 0
    %733 = vmatpush.bf16.msra.mxu0 %v720
    %734 = vmatpush.bf16.msra.mxu0 %v719
    %735 = vmatpush.bf16.msra.mxu0 %v718
    %736 = vmatpush.bf16.msra.mxu0 %v717
    %737 = vmatmul.bf16.gmra.mxu0 %v727
    %v738 = vpop.f32.mrf.mxu0
    %v739 = vadd.f32 %v700, %v738
    %v740 = vpop.f32.mrf.mxu0
    %v741 = vadd.f32 %v700, %v740
    %742 = vdwg.mxu0
    %v743 = vadd.f32 %v574, %v739
    %v744 = vadd.f32 %v575, %v741
    %v745 = vsel %vm39, %v743, 0.0
    %746 = vadd.xlane.f32.xlu0 %v745
    %v747 = vpop.xlane.xlu0 %746
    %v748 = vsel %vm39, %v744, 0.0
    %749 = vadd.xlane.f32.xlu0 %v748
    %v750 = vpop.xlane.xlu0 %749
    %v751 = vmul.f32 %v747, %v52
    %v752 = vmul.f32 %v750, %v52
    %v753 = vsub.f32 %v743, %v751
    %v754 = vsub.f32 %v744, %v752
    %v755 = vmul.f32 %v753, %v753
    %v756 = vmul.f32 %v754, %v754
    %v757 = vsel %vm39, %v755, 0.0
    %758 = vadd.xlane.f32.xlu0 %v757
    %v759 = vpop.xlane.xlu0 %758
    %v760 = vsel %vm39, %v756, 0.0
    %761 = vadd.xlane.f32.xlu0 %v760
    %v762 = vpop.xlane.xlu0 %761
    %v763 = vmul.f32 %v759, %v52
    %v764 = vmul.f32 %v762, %v52
    %v765 = vadd.f32 %v763, 1e-12
    %v766 = vadd.f32 %v764, 1e-12
    %v767 = vrsqrt.pop %v765
    %v768 = vmul.f32 %v767, %v765
    %v769 = vmul.f32 %v768, %v767
    %v770 = vmul.f32 0.5, %v769
    %v771 = vsub.f32 1.5, %v770
    %v772 = vmul.f32 %v767, %v771
    %vm773 = vweird.f32 %v765
    %vm774 = vweird.f32 %v767
    %vm775 = vmor %vm773, %vm774
    %v776 = vsel %vm775, %v767, %v772
    %v777 = vrsqrt.pop %v766
    %v778 = vmul.f32 %v777, %v766
    %v779 = vmul.f32 %v778, %v777
    %v780 = vmul.f32 0.5, %v779
    %v781 = vsub.f32 1.5, %v780
    %v782 = vmul.f32 %v777, %v781
    %vm783 = vweird.f32 %v766
    %vm784 = vweird.f32 %v777
    %vm785 = vmor %vm783, %vm784
    %v786 = vsel %vm785, %v777, %v782
    %v787 = vmul.f32 %v753, %v776
    %v788 = vmul.f32 %v754, %v786
    %v789 = vperm.slane %v97, 6
    %v790 = vmul.f32 %v787, %v789
    %v791 = vmul.f32 %v788, %v789
    %v792 = vperm.slane %v97, 7
    %v793 = vadd.f32 %v790, %v792
    %v794 = vadd.f32 %v791, %v792
    %s795 = scalar_lea.vmem %s6, 8
    %v796 = vld [vmem:[%s795] sm:$0xff]
    %v797 = vpack.c.bf16 %v794, %v793
    %s798 = scalar_lea.vmem %s2, 16
    %v799 = vld [vmem:[%s798] sm:$0xf]
    %v800 = vld [vmem:[%s798 + $0x4] sm:$0xf]
    %v801 = vld [vmem:[%s798 + $0x8] sm:$0xf]
    %v802 = vld [vmem:[%s798 + $0xc] sm:$0xf]
    %v803 = vperm.slane %v796, 0
    %v808 = vunpack.c.l.b16 %v799
    %v809 = vunpack.c.l.b16 %v800
    %v810 = vunpack.c.l.b16 %v801
    %v811 = vunpack.c.l.b16 %v802
    %v812 = vpack.c.b16 %v809, %v808
    %v813 = vpack.c.b16 %v811, %v810
    %v817 = vsel %vm39, %v797, 0
    %819 = vmatpush.bf16.msra.mxu0 0
    %820 = vmatpush.bf16.msra.mxu0 0
    %821 = vmatpush.bf16.msra.mxu0 0
    %822 = vmatpush.bf16.msra.mxu0 0
    %823 = vmatpush.bf16.msra.mxu0 0
    %824 = vmatpush.bf16.msra.mxu0 0
    %825 = vmatpush.bf16.msra.mxu0 %v813
    %826 = vmatpush.bf16.msra.mxu0 %v812
    %827 = vmatmul.bf16.gmra.mxu0 %v817
    %v828 = vpop.f32.mrf.mxu0
    %v829 = vadd.f32 %v803, %v828
    %v830 = vpop.f32.mrf.mxu0
    %v831 = vadd.f32 %v803, %v830
    %832 = vdwg.mxu0
    %835 = vrot.lane.b32.xlu0 %v829, 96
    %v836 = vpop.permute.xlu0 %835
    %837 = vrot.lane.b32.xlu0 %v831, 96
    %v838 = vpop.permute.xlu0 %837
    %841 = vxpose.xlu0.b32.start [1/16] %v836, 128
    %842 = vxpose.xlu0.b32.cont [2/16] %v838, 128
    %843 = vxpose.xlu0.b32.cont [3/16] 0.0, 128
    %844 = vxpose.xlu0.b32.cont [4/16] 0.0, 128
    %845 = vxpose.xlu0.b32.cont [5/16] 0.0, 128
    %846 = vxpose.xlu0.b32.cont [6/16] 0.0, 128
    %847 = vxpose.xlu0.b32.cont [7/16] 0.0, 128
    %848 = vxpose.xlu0.b32.cont [8/16] 0.0, 128
    %849 = vxpose.xlu0.b32.cont [9/16] 0.0, 128
    %850 = vxpose.xlu0.b32.cont [10/16] 0.0, 128
    %851 = vxpose.xlu0.b32.cont [11/16] 0.0, 128
    %852 = vxpose.xlu0.b32.cont [12/16] 0.0, 128
    %853 = vxpose.xlu0.b32.cont [13/16] 0.0, 128
    %854 = vxpose.xlu0.b32.cont [14/16] 0.0, 128
    %855 = vxpose.xlu0.b32.cont [15/16] 0.0, 128
    %856 = vxpose.xlu0.b32.end [16/16] 0.0, 128
    %v857 = vpop.trf.xlu0
    %v858 = vpop.trf.xlu0
    %v859 = vpop.trf.xlu0
    %v860 = vpop.trf.xlu0
    %v861 = vpop.trf.xlu0
    %v862 = vpop.trf.xlu0
    %v863 = vpop.trf.xlu0
    %v864 = vpop.trf.xlu0
    %v865 = vpop.trf.xlu0
    %v866 = vpop.trf.xlu0
    %v867 = vpop.trf.xlu0
    %v868 = vpop.trf.xlu0
    %v869 = vpop.trf.xlu0
    %v870 = vpop.trf.xlu0
    %v871 = vpop.trf.xlu0
    %v872 = vpop.trf.xlu0
    %v873 = vpack.c.bf16 %v831, %v829
    %v874 = vpack.c.bf16 %v857, %v857
    %v876 = vsel %vm175, %v873, 0
    %v879 = vsel %vm179, %v874, 0
    %881 = vmatpush.bf16.msra.mxu0 0
    %882 = vmatpush.bf16.msra.mxu0 0
    %883 = vmatpush.bf16.msra.mxu0 0
    %884 = vmatpush.bf16.msra.mxu0 0
    %885 = vmatpush.bf16.msra.mxu0 0
    %886 = vmatpush.bf16.msra.mxu0 0
    %887 = vmatpush.bf16.msra.mxu0 0
    %888 = vmatpush.bf16.msra.mxu0 %v879
    %889 = vmatmul.bf16.gmra.mxu0 %v876
    %v890 = vpop.f32.mrf.mxu0
    %v891 = vadd.f32 0.0, %v890
    %v892 = vpop.f32.mrf.mxu0
    %v893 = vadd.f32 0.0, %v892
    %894 = vdwg.mxu0
    %v895 = vmul.f32 %v891, 0.35355338
    %v896 = vmul.f32 %v893, 0.35355338
    %v897 = vadd.f32 %v895, %v34
    %v898 = vadd.f32 %v896, %v35
    %v899 = vsel %vm201, %v897, -inf
    %900 = vmax.xlane.f32.xlu0 %v899
    %v901 = vpop.xlane.xlu0 %900
    %v902 = vsel %vm201, %v898, -inf
    %903 = vmax.xlane.f32.xlu0 %v902
    %v904 = vpop.xlane.xlu0 %903
    %v905 = vsub.f32 %v897, %v901
    %v906 = vsub.f32 %v898, %v904
    %v907 = vmul.f32 %v905, 1.442695
    %v908 = vpow.pop %v907
    %v909 = vmul.f32 %v906, 1.442695
    %v910 = vpow.pop %v909
    %v911 = vsel %vm201, %v908, 0.0
    %912 = vadd.xlane.f32.xlu0 %v911
    %v913 = vpop.xlane.xlu0 %912
    %v914 = vsel %vm201, %v910, 0.0
    %915 = vadd.xlane.f32.xlu0 %v914
    %v916 = vpop.xlane.xlu0 %915
    %v917 = vrcp.pop %v913
    %v918 = vrcp.pop %v916
    %v919 = vmul.f32 %v908, %v917
    %v920 = vmul.f32 %v910, %v918
    %v921 = vpack.c.bf16 %v920, %v919
    %923 = vrot.lane.b32.xlu0 %v873, 64
    %v924 = vpop.permute.xlu0 %923
    %v927 = vsel %vm201, %v921, 0
    %929 = vmatpush.bf16.msra.mxu0 0
    %930 = vmatpush.bf16.msra.mxu0 0
    %931 = vmatpush.bf16.msra.mxu0 0
    %932 = vmatpush.bf16.msra.mxu0 0
    %933 = vmatpush.bf16.msra.mxu0 0
    %934 = vmatpush.bf16.msra.mxu0 0
    %935 = vmatpush.bf16.msra.mxu0 0
    %936 = vmatpush.bf16.msra.mxu0 %v924
    %937 = vmatmul.bf16.gmra.mxu0 %v927
    %v938 = vpop.f32.mrf.mxu0
    %v939 = vadd.f32 0.0, %v938
    %v940 = vpop.f32.mrf.mxu0
    %v941 = vadd.f32 0.0, %v940
    %942 = vdwg.mxu0
    %v943 = vpack.c.bf16 %v858, %v858
    %944 = vrot.lane.b32.xlu0 %v873, 120
    %v945 = vpop.permute.xlu0 %944
    %v947 = vsel %vm175, %v945, 0
    %v950 = vsel %vm179, %v943, 0
    %952 = vmatpush.bf16.msra.mxu0 0
    %953 = vmatpush.bf16.msra.mxu0 0
    %954 = vmatpush.bf16.msra.mxu0 0
    %955 = vmatpush.bf16.msra.mxu0 0
    %956 = vmatpush.bf16.msra.mxu0 0
    %957 = vmatpush.bf16.msra.mxu0 0
    %958 = vmatpush.bf16.msra.mxu0 0
    %959 = vmatpush.bf16.msra.mxu0 %v950
    %960 = vmatmul.bf16.gmra.mxu0 %v947
    %v961 = vpop.f32.mrf.mxu0
    %v962 = vadd.f32 0.0, %v961
    %v963 = vpop.f32.mrf.mxu0
    %v964 = vadd.f32 0.0, %v963
    %965 = vdwg.mxu0
    %v966 = vmul.f32 %v962, 0.35355338
    %v967 = vmul.f32 %v964, 0.35355338
    %v968 = vadd.f32 %v966, %v34
    %v969 = vadd.f32 %v967, %v35
    %v970 = vsel %vm201, %v968, -inf
    %971 = vmax.xlane.f32.xlu0 %v970
    %v972 = vpop.xlane.xlu0 %971
    %v973 = vsel %vm201, %v969, -inf
    %974 = vmax.xlane.f32.xlu0 %v973
    %v975 = vpop.xlane.xlu0 %974
    %v976 = vsub.f32 %v968, %v972
    %v977 = vsub.f32 %v969, %v975
    %v978 = vmul.f32 %v976, 1.442695
    %v979 = vpow.pop %v978
    %v980 = vmul.f32 %v977, 1.442695
    %v981 = vpow.pop %v980
    %v982 = vsel %vm201, %v979, 0.0
    %983 = vadd.xlane.f32.xlu0 %v982
    %v984 = vpop.xlane.xlu0 %983
    %v985 = vsel %vm201, %v981, 0.0
    %986 = vadd.xlane.f32.xlu0 %v985
    %v987 = vpop.xlane.xlu0 %986
    %v988 = vrcp.pop %v984
    %v989 = vrcp.pop %v987
    %v990 = vmul.f32 %v979, %v988
    %v991 = vmul.f32 %v981, %v989
    %v992 = vpack.c.bf16 %v991, %v990
    %993 = vrot.lane.b32.xlu0 %v873, 56
    %v994 = vpop.permute.xlu0 %993
    %v997 = vsel %vm201, %v992, 0
    %999 = vmatpush.bf16.msra.mxu0 0
    %1000 = vmatpush.bf16.msra.mxu0 0
    %1001 = vmatpush.bf16.msra.mxu0 0
    %1002 = vmatpush.bf16.msra.mxu0 0
    %1003 = vmatpush.bf16.msra.mxu0 0
    %1004 = vmatpush.bf16.msra.mxu0 0
    %1005 = vmatpush.bf16.msra.mxu0 0
    %1006 = vmatpush.bf16.msra.mxu0 %v994
    %1007 = vmatmul.bf16.gmra.mxu0 %v997
    %v1008 = vpop.f32.mrf.mxu0
    %v1009 = vadd.f32 0.0, %v1008
    %v1010 = vpop.f32.mrf.mxu0
    %v1011 = vadd.f32 0.0, %v1010
    %1012 = vdwg.mxu0
    %v1013 = vpack.c.bf16 %v859, %v859
    %1014 = vrot.lane.b32.xlu0 %v873, 112
    %v1015 = vpop.permute.xlu0 %1014
    %v1017 = vsel %vm175, %v1015, 0
    %v1020 = vsel %vm179, %v1013, 0
    %1022 = vmatpush.bf16.msra.mxu0 0
    %1023 = vmatpush.bf16.msra.mxu0 0
    %1024 = vmatpush.bf16.msra.mxu0 0
    %1025 = vmatpush.bf16.msra.mxu0 0
    %1026 = vmatpush.bf16.msra.mxu0 0
    %1027 = vmatpush.bf16.msra.mxu0 0
    %1028 = vmatpush.bf16.msra.mxu0 0
    %1029 = vmatpush.bf16.msra.mxu0 %v1020
    %1030 = vmatmul.bf16.gmra.mxu0 %v1017
    %v1031 = vpop.f32.mrf.mxu0
    %v1032 = vadd.f32 0.0, %v1031
    %v1033 = vpop.f32.mrf.mxu0
    %v1034 = vadd.f32 0.0, %v1033
    %1035 = vdwg.mxu0
    %v1036 = vmul.f32 %v1032, 0.35355338
    %v1037 = vmul.f32 %v1034, 0.35355338
    %v1038 = vadd.f32 %v1036, %v34
    %v1039 = vadd.f32 %v1037, %v35
    %v1040 = vsel %vm201, %v1038, -inf
    %1041 = vmax.xlane.f32.xlu0 %v1040
    %v1042 = vpop.xlane.xlu0 %1041
    %v1043 = vsel %vm201, %v1039, -inf
    %1044 = vmax.xlane.f32.xlu0 %v1043
    %v1045 = vpop.xlane.xlu0 %1044
    %v1046 = vsub.f32 %v1038, %v1042
    %v1047 = vsub.f32 %v1039, %v1045
    %v1048 = vmul.f32 %v1046, 1.442695
    %v1049 = vpow.pop %v1048
    %v1050 = vmul.f32 %v1047, 1.442695
    %v1051 = vpow.pop %v1050
    %v1052 = vsel %vm201, %v1049, 0.0
    %1053 = vadd.xlane.f32.xlu0 %v1052
    %v1054 = vpop.xlane.xlu0 %1053
    %v1055 = vsel %vm201, %v1051, 0.0
    %1056 = vadd.xlane.f32.xlu0 %v1055
    %v1057 = vpop.xlane.xlu0 %1056
    %v1058 = vrcp.pop %v1054
    %v1059 = vrcp.pop %v1057
    %v1060 = vmul.f32 %v1049, %v1058
    %v1061 = vmul.f32 %v1051, %v1059
    %v1062 = vpack.c.bf16 %v1061, %v1060
    %1063 = vrot.lane.b32.xlu0 %v873, 48
    %v1064 = vpop.permute.xlu0 %1063
    %v1067 = vsel %vm201, %v1062, 0
    %1069 = vmatpush.bf16.msra.mxu0 0
    %1070 = vmatpush.bf16.msra.mxu0 0
    %1071 = vmatpush.bf16.msra.mxu0 0
    %1072 = vmatpush.bf16.msra.mxu0 0
    %1073 = vmatpush.bf16.msra.mxu0 0
    %1074 = vmatpush.bf16.msra.mxu0 0
    %1075 = vmatpush.bf16.msra.mxu0 0
    %1076 = vmatpush.bf16.msra.mxu0 %v1064
    %1077 = vmatmul.bf16.gmra.mxu0 %v1067
    %v1078 = vpop.f32.mrf.mxu0
    %v1079 = vadd.f32 0.0, %v1078
    %v1080 = vpop.f32.mrf.mxu0
    %v1081 = vadd.f32 0.0, %v1080
    %1082 = vdwg.mxu0
    %v1083 = vpack.c.bf16 %v860, %v860
    %1084 = vrot.lane.b32.xlu0 %v873, 104
    %v1085 = vpop.permute.xlu0 %1084
    %v1087 = vsel %vm175, %v1085, 0
    %v1090 = vsel %vm179, %v1083, 0
    %1092 = vmatpush.bf16.msra.mxu0 0
    %1093 = vmatpush.bf16.msra.mxu0 0
    %1094 = vmatpush.bf16.msra.mxu0 0
    %1095 = vmatpush.bf16.msra.mxu0 0
    %1096 = vmatpush.bf16.msra.mxu0 0
    %1097 = vmatpush.bf16.msra.mxu0 0
    %1098 = vmatpush.bf16.msra.mxu0 0
    %1099 = vmatpush.bf16.msra.mxu0 %v1090
    %1100 = vmatmul.bf16.gmra.mxu0 %v1087
    %v1101 = vpop.f32.mrf.mxu0
    %v1102 = vadd.f32 0.0, %v1101
    %v1103 = vpop.f32.mrf.mxu0
    %v1104 = vadd.f32 0.0, %v1103
    %1105 = vdwg.mxu0
    %v1106 = vmul.f32 %v1102, 0.35355338
    %v1107 = vmul.f32 %v1104, 0.35355338
    %v1108 = vadd.f32 %v1106, %v34
    %v1109 = vadd.f32 %v1107, %v35
    %v1110 = vsel %vm201, %v1108, -inf
    %1111 = vmax.xlane.f32.xlu0 %v1110
    %v1112 = vpop.xlane.xlu0 %1111
    %v1113 = vsel %vm201, %v1109, -inf
    %1114 = vmax.xlane.f32.xlu0 %v1113
    %v1115 = vpop.xlane.xlu0 %1114
    %v1116 = vsub.f32 %v1108, %v1112
    %v1117 = vsub.f32 %v1109, %v1115
    %v1118 = vmul.f32 %v1116, 1.442695
    %v1119 = vpow.pop %v1118
    %v1120 = vmul.f32 %v1117, 1.442695
    %v1121 = vpow.pop %v1120
    %v1122 = vsel %vm201, %v1119, 0.0
    %1123 = vadd.xlane.f32.xlu0 %v1122
    %v1124 = vpop.xlane.xlu0 %1123
    %v1125 = vsel %vm201, %v1121, 0.0
    %1126 = vadd.xlane.f32.xlu0 %v1125
    %v1127 = vpop.xlane.xlu0 %1126
    %v1128 = vrcp.pop %v1124
    %v1129 = vrcp.pop %v1127
    %v1130 = vmul.f32 %v1119, %v1128
    %v1131 = vmul.f32 %v1121, %v1129
    %v1132 = vpack.c.bf16 %v1131, %v1130
    %1133 = vrot.lane.b32.xlu0 %v873, 40
    %v1134 = vpop.permute.xlu0 %1133
    %v1137 = vsel %vm201, %v1132, 0
    %1139 = vmatpush.bf16.msra.mxu0 0
    %1140 = vmatpush.bf16.msra.mxu0 0
    %1141 = vmatpush.bf16.msra.mxu0 0
    %1142 = vmatpush.bf16.msra.mxu0 0
    %1143 = vmatpush.bf16.msra.mxu0 0
    %1144 = vmatpush.bf16.msra.mxu0 0
    %1145 = vmatpush.bf16.msra.mxu0 0
    %1146 = vmatpush.bf16.msra.mxu0 %v1134
    %1147 = vmatmul.bf16.gmra.mxu0 %v1137
    %v1148 = vpop.f32.mrf.mxu0
    %v1149 = vadd.f32 0.0, %v1148
    %v1150 = vpop.f32.mrf.mxu0
    %v1151 = vadd.f32 0.0, %v1150
    %1152 = vdwg.mxu0
    %1155 = vrot.lane.b32.xlu0 %v1009, 8
    %v1156 = vpop.permute.xlu0 %1155
    %1157 = vrot.lane.b32.xlu0 %v1011, 8
    %v1158 = vpop.permute.xlu0 %1157
    %1163 = vrot.lane.b32.xlu0 %v1079, 16
    %v1164 = vpop.permute.xlu0 %1163
    %1165 = vrot.lane.b32.xlu0 %v1081, 16
    %v1166 = vpop.permute.xlu0 %1165
    %1171 = vrot.lane.b32.xlu0 %v1149, 24
    %v1172 = vpop.permute.xlu0 %1171
    %1173 = vrot.lane.b32.xlu0 %v1151, 24
    %v1174 = vpop.permute.xlu0 %1173
    %v1177 = vsel %vm175, %v939, %v1156
    %v1178 = vsel %vm175, %v941, %v1158
    %v1179 = vsel %vm201, %v1177, %v1164
    %v1180 = vsel %vm201, %v1178, %v1166
    %v1181 = vsel %vm484, %v1179, %v1172
    %v1182 = vsel %vm484, %v1180, %v1174
    %v1183 = vpack.c.bf16 %v1182, %v1181
    %s1184 = scalar_lea.vmem %s3, 16
    %v1185 = vld [vmem:[%s1184] sm:$0xf]
    %v1186 = vld [vmem:[%s1184 + $0x4] sm:$0xf]
    %v1187 = vld [vmem:[%s1184 + $0x8] sm:$0xf]
    %v1188 = vld [vmem:[%s1184 + $0xc] sm:$0xf]
    %v1193 = vunpack.c.l.b16 %v1185
    %v1194 = vunpack.c.l.b16 %v1186
    %v1195 = vunpack.c.l.b16 %v1187
    %v1196 = vunpack.c.l.b16 %v1188
    %v1197 = vpack.c.b16 %v1194, %v1193
    %v1198 = vpack.c.b16 %v1196, %v1195
    %v1202 = vsel %vm39, %v1183, 0
    %1204 = vmatpush.bf16.msra.mxu0 0
    %1205 = vmatpush.bf16.msra.mxu0 0
    %1206 = vmatpush.bf16.msra.mxu0 0
    %1207 = vmatpush.bf16.msra.mxu0 0
    %1208 = vmatpush.bf16.msra.mxu0 0
    %1209 = vmatpush.bf16.msra.mxu0 0
    %1210 = vmatpush.bf16.msra.mxu0 %v1198
    %1211 = vmatpush.bf16.msra.mxu0 %v1197
    %1212 = vmatmul.bf16.gmra.mxu0 %v1202
    %v1213 = vpop.f32.mrf.mxu0
    %v1214 = vadd.f32 0.0, %v1213
    %v1215 = vpop.f32.mrf.mxu0
    %v1216 = vadd.f32 0.0, %v1215
    %1217 = vdwg.mxu0
    %v1218 = vadd.f32 %v793, %v1214
    %v1219 = vadd.f32 %v794, %v1216
    %v1220 = vperm.slane %v796, 1
    %v1221 = vadd.f32 %v1218, %v1220
    %v1222 = vadd.f32 %v1219, %v1220
    %v1223 = vsel %vm39, %v1221, 0.0
    %1224 = vadd.xlane.f32.xlu0 %v1223
    %v1225 = vpop.xlane.xlu0 %1224
    %v1226 = vsel %vm39, %v1222, 0.0
    %1227 = vadd.xlane.f32.xlu0 %v1226
    %v1228 = vpop.xlane.xlu0 %1227
    %v1229 = vmul.f32 %v1225, %v52
    %v1230 = vmul.f32 %v1228, %v52
    %v1231 = vsub.f32 %v1221, %v1229
    %v1232 = vsub.f32 %v1222, %v1230
    %v1233 = vmul.f32 %v1231, %v1231
    %v1234 = vmul.f32 %v1232, %v1232
    %v1235 = vsel %vm39, %v1233, 0.0
    %1236 = vadd.xlane.f32.xlu0 %v1235
    %v1237 = vpop.xlane.xlu0 %1236
    %v1238 = vsel %vm39, %v1234, 0.0
    %1239 = vadd.xlane.f32.xlu0 %v1238
    %v1240 = vpop.xlane.xlu0 %1239
    %v1241 = vmul.f32 %v1237, %v52
    %v1242 = vmul.f32 %v1240, %v52
    %v1243 = vadd.f32 %v1241, 1e-12
    %v1244 = vadd.f32 %v1242, 1e-12
    %v1245 = vrsqrt.pop %v1243
    %v1246 = vmul.f32 %v1245, %v1243
    %v1247 = vmul.f32 %v1246, %v1245
    %v1248 = vmul.f32 0.5, %v1247
    %v1249 = vsub.f32 1.5, %v1248
    %v1250 = vmul.f32 %v1245, %v1249
    %vm1251 = vweird.f32 %v1243
    %vm1252 = vweird.f32 %v1245
    %vm1253 = vmor %vm1251, %vm1252
    %v1254 = vsel %vm1253, %v1245, %v1250
    %v1255 = vrsqrt.pop %v1244
    %v1256 = vmul.f32 %v1255, %v1244
    %v1257 = vmul.f32 %v1256, %v1255
    %v1258 = vmul.f32 0.5, %v1257
    %v1259 = vsub.f32 1.5, %v1258
    %v1260 = vmul.f32 %v1255, %v1259
    %vm1261 = vweird.f32 %v1244
    %vm1262 = vweird.f32 %v1255
    %vm1263 = vmor %vm1261, %vm1262
    %v1264 = vsel %vm1263, %v1255, %v1260
    %v1265 = vmul.f32 %v1231, %v1254
    %v1266 = vmul.f32 %v1232, %v1264
    %v1267 = vperm.slane %v796, 2
    %v1268 = vmul.f32 %v1265, %v1267
    %v1269 = vmul.f32 %v1266, %v1267
    %v1270 = vperm.slane %v796, 3
    %v1271 = vadd.f32 %v1268, %v1270
    %v1272 = vadd.f32 %v1269, %v1270
    %v1273 = vpack.c.bf16 %v1272, %v1271
    %s1274 = scalar_lea.vmem %s4, 16
    %v1275 = vld [vmem:[%s1274] sm:$0xf]
    %v1276 = vld [vmem:[%s1274 + $0x4] sm:$0xf]
    %v1277 = vld [vmem:[%s1274 + $0x8] sm:$0xf]
    %v1278 = vld [vmem:[%s1274 + $0xc] sm:$0xf]
    %v1279 = vperm.slane %v796, 4
    %v1284 = vunpack.c.l.b16 %v1275
    %v1285 = vunpack.c.l.b16 %v1276
    %v1286 = vunpack.c.l.b16 %v1277
    %v1287 = vunpack.c.l.b16 %v1278
    %v1288 = vpack.c.b16 %v1285, %v1284
    %v1289 = vpack.c.b16 %v1287, %v1286
    %v1293 = vsel %vm39, %v1273, 0
    %1295 = vmatpush.bf16.msra.mxu0 0
    %1296 = vmatpush.bf16.msra.mxu0 0
    %1297 = vmatpush.bf16.msra.mxu0 0
    %1298 = vmatpush.bf16.msra.mxu0 0
    %1299 = vmatpush.bf16.msra.mxu0 0
    %1300 = vmatpush.bf16.msra.mxu0 0
    %1301 = vmatpush.bf16.msra.mxu0 %v1289
    %1302 = vmatpush.bf16.msra.mxu0 %v1288
    %1303 = vmatmul.bf16.gmra.mxu0 %v1293
    %v1304 = vpop.f32.mrf.mxu0
    %v1305 = vadd.f32 %v1279, %v1304
    %v1306 = vpop.f32.mrf.mxu0
    %v1307 = vadd.f32 %v1279, %v1306
    %1308 = vdwg.mxu0
    %v1309 = vmul.f32 %v1305, 0.5
    %v1310 = vmul.f32 %v1307, 0.5
    %v1311 = vmul.f32 %v1305, 0.70710677
    %v1312 = vmul.f32 %v1307, 0.70710677
    %vm1313 = vcmp.ge.f32.partialorder %v1311, 0.0
    %vm1314 = vcmp.ge.f32.partialorder %v1312, 0.0
    %v1315 = vsel %vm1313, 1.0, -1.0
    %v1316 = vsel %vm1314, 1.0, -1.0
    %v1317 = vand.u32 2147483647, %v1311
    %v1318 = vand.u32 2147483647, %v1312
    %v1319 = vmul.f32 %v1317, 0.3275911
    %v1320 = vmul.f32 %v1318, 0.3275911
    %v1321 = vadd.f32 %v1319, 1.0
    %v1322 = vadd.f32 %v1320, 1.0
    %v1323 = vrcp.pop %v1321
    %v1324 = vmul.f32 %v1321, %v1323
    %v1325 = vsub.f32 1.0, %v1324
    %v1326 = vmul.f32 %v1323, %v1325
    %v1327 = vadd.f32 %v1323, %v1326
    %vm1328 = vweird.f32 %v1321
    %vm1329 = vweird.f32 %v1323
    %vm1330 = vmor %vm1328, %vm1329
    %v1331 = vsel %vm1330, %v1323, %v1327
    %v1332 = vand.u32 2147483647, %v1321
    %vm1333 = vcmp.eq.f32.partialorder %v1332, 8.507059e+37
    %v1334 = vand.u32 %v1321, 2147483648
    %v1335 = vor.u32 1.1754944e-38, %v1334
    %v1336 = vsel %vm1333, %v1335, %v1331
    %v1337 = vmul.f32 1.0, %v1336
    %v1338 = vrcp.pop %v1322
    %v1339 = vmul.f32 %v1322, %v1338
    %v1340 = vsub.f32 1.0, %v1339
    %v1341 = vmul.f32 %v1338, %v1340
    %v1342 = vadd.f32 %v1338, %v1341
    %vm1343 = vweird.f32 %v1322
    %vm1344 = vweird.f32 %v1338
    %vm1345 = vmor %vm1343, %vm1344
    %v1346 = vsel %vm1345, %v1338, %v1342
    %v1347 = vand.u32 2147483647, %v1322
    %vm1348 = vcmp.eq.f32.partialorder %v1347, 8.507059e+37
    %v1349 = vand.u32 %v1322, 2147483648
    %v1350 = vor.u32 1.1754944e-38, %v1349
    %v1351 = vsel %vm1348, %v1350, %v1346
    %v1352 = vmul.f32 1.0, %v1351
    %v1353 = vmul.f32 %v1337, 1.0614054
    %v1354 = vmul.f32 %v1352, 1.0614054
    %v1355 = vadd.f32 %v1353, -1.4531521
    %v1356 = vadd.f32 %v1354, -1.4531521
    %v1357 = vmul.f32 %v1355, %v1337
    %v1358 = vmul.f32 %v1356, %v1352
    %v1359 = vadd.f32 %v1357, 1.4214138
    %v1360 = vadd.f32 %v1358, 1.4214138
    %v1361 = vmul.f32 %v1359, %v1337
    %v1362 = vmul.f32 %v1360, %v1352
    %v1363 = vadd.f32 %v1361, -0.28449672
    %v1364 = vadd.f32 %v1362, -0.28449672
    %v1365 = vmul.f32 %v1363, %v1337
    %v1366 = vmul.f32 %v1364, %v1352
    %v1367 = vadd.f32 %v1365, 0.2548296
    %v1368 = vadd.f32 %v1366, 0.2548296
    %v1369 = vmul.f32 %v1367, %v1337
    %v1370 = vmul.f32 %v1368, %v1352
    %v1371 = vsub.f32 0.0, %v1317
    %v1372 = vsub.f32 0.0, %v1318
    %v1373 = vmul.f32 %v1371, %v1317
    %v1374 = vmul.f32 %v1372, %v1318
    %v1375 = vmul.f32 %v1373, 1.442695
    %v1376 = vpow.pop %v1375
    %v1377 = vmul.f32 %v1374, 1.442695
    %v1378 = vpow.pop %v1377
    %v1379 = vmul.f32 %v1369, %v1376
    %v1380 = vmul.f32 %v1370, %v1378
    %v1381 = vsub.f32 1.0, %v1379
    %v1382 = vsub.f32 1.0, %v1380
    %v1383 = vmul.f32 %v1315, %v1381
    %v1384 = vmul.f32 %v1316, %v1382
    %v1385 = vadd.f32 %v1383, 1.0
    %v1386 = vadd.f32 %v1384, 1.0
    %v1387 = vmul.f32 %v1309, %v1385
    %v1388 = vmul.f32 %v1310, %v1386
    %v1389 = vpack.c.bf16 %v1388, %v1387
    %s1390 = scalar_lea.vmem %s5, 32
    %v1391 = vld [vmem:[%s1390] sm:$0xf]
    %v1392 = vld [vmem:[%s1390 + $0x4] sm:$0xf]
    %v1393 = vld [vmem:[%s1390 + $0x8] sm:$0xf]
    %v1394 = vld [vmem:[%s1390 + $0xc] sm:$0xf]
    %v1395 = vld [vmem:[%s1390 + $0x10] sm:$0xf]
    %v1396 = vld [vmem:[%s1390 + $0x14] sm:$0xf]
    %v1397 = vld [vmem:[%s1390 + $0x18] sm:$0xf]
    %v1398 = vld [vmem:[%s1390 + $0x1c] sm:$0xf]
    %v1399 = vperm.slane %v796, 5
    %v1408 = vunpack.c.l.b16 %v1391
    %v1409 = vunpack.c.l.b16 %v1392
    %v1410 = vunpack.c.l.b16 %v1393
    %v1411 = vunpack.c.l.b16 %v1394
    %v1412 = vunpack.c.l.b16 %v1395
    %v1413 = vunpack.c.l.b16 %v1396
    %v1414 = vunpack.c.l.b16 %v1397
    %v1415 = vunpack.c.l.b16 %v1398
    %v1416 = vpack.c.b16 %v1409, %v1408
    %v1417 = vpack.c.b16 %v1411, %v1410
    %v1418 = vpack.c.b16 %v1413, %v1412
    %v1419 = vpack.c.b16 %v1415, %v1414
    %v1425 = vsel %vm725, %v1389, 0
    %1427 = vmatpush.bf16.msra.mxu0 0
    %1428 = vmatpush.bf16.msra.mxu0 0
    %1429 = vmatpush.bf16.msra.mxu0 0
    %1430 = vmatpush.bf16.msra.mxu0 0
    %1431 = vmatpush.bf16.msra.mxu0 %v1419
    %1432 = vmatpush.bf16.msra.mxu0 %v1418
    %1433 = vmatpush.bf16.msra.mxu0 %v1417
    %1434 = vmatpush.bf16.msra.mxu0 %v1416
    %1435 = vmatmul.bf16.gmra.mxu0 %v1425
    %v1436 = vpop.f32.mrf.mxu0
    %v1437 = vadd.f32 %v1399, %v1436
    %v1438 = vpop.f32.mrf.mxu0
    %v1439 = vadd.f32 %v1399, %v1438
    %1440 = vdwg.mxu0
    %v1441 = vadd.f32 %v1271, %v1437
    %v1442 = vadd.f32 %v1272, %v1439
    %v1443 = vsel %vm39, %v1441, 0.0
    %1444 = vadd.xlane.f32.xlu0 %v1443
    %v1445 = vpop.xlane.xlu0 %1444
    %v1446 = vsel %vm39, %v1442, 0.0
    %1447 = vadd.xlane.f32.xlu0 %v1446
    %v1448 = vpop.xlane.xlu0 %1447
    %v1449 = vmul.f32 %v1445, %v52
    %v1450 = vmul.f32 %v1448, %v52
    %v1451 = vsub.f32 %v1441, %v1449
    %v1452 = vsub.f32 %v1442, %v1450
    %v1453 = vmul.f32 %v1451, %v1451
    %v1454 = vmul.f32 %v1452, %v1452
    %v1455 = vsel %vm39, %v1453, 0.0
    %1456 = vadd.xlane.f32.xlu0 %v1455
    %v1457 = vpop.xlane.xlu0 %1456
    %v1458 = vsel %vm39, %v1454, 0.0
    %1459 = vadd.xlane.f32.xlu0 %v1458
    %v1460 = vpop.xlane.xlu0 %1459
    %v1461 = vmul.f32 %v1457, %v52
    %v1462 = vmul.f32 %v1460, %v52
    %v1463 = vadd.f32 %v1461, 1e-12
    %v1464 = vadd.f32 %v1462, 1e-12
    %v1465 = vrsqrt.pop %v1463
    %v1466 = vmul.f32 %v1465, %v1463
    %v1467 = vmul.f32 %v1466, %v1465
    %v1468 = vmul.f32 0.5, %v1467
    %v1469 = vsub.f32 1.5, %v1468
    %v1470 = vmul.f32 %v1465, %v1469
    %vm1471 = vweird.f32 %v1463
    %vm1472 = vweird.f32 %v1465
    %vm1473 = vmor %vm1471, %vm1472
    %v1474 = vsel %vm1473, %v1465, %v1470
    %v1475 = vrsqrt.pop %v1464
    %v1476 = vmul.f32 %v1475, %v1464
    %v1477 = vmul.f32 %v1476, %v1475
    %v1478 = vmul.f32 0.5, %v1477
    %v1479 = vsub.f32 1.5, %v1478
    %v1480 = vmul.f32 %v1475, %v1479
    %vm1481 = vweird.f32 %v1464
    %vm1482 = vweird.f32 %v1475
    %vm1483 = vmor %vm1481, %vm1482
    %v1484 = vsel %vm1483, %v1475, %v1480
    %v1485 = vmul.f32 %v1451, %v1474
    %v1486 = vmul.f32 %v1452, %v1484
    %v1487 = vperm.slane %v796, 6
    %v1488 = vmul.f32 %v1485, %v1487
    %v1489 = vmul.f32 %v1486, %v1487
    %v1490 = vperm.slane %v796, 7
    %v1491 = vadd.f32 %v1488, %v1490
    %v1492 = vadd.f32 %v1489, %v1490
    %v1494 = vrot.slane %v1492, 7
    %vm1496 = vcmask 1040384
    %v1497 = vsel %vm1496, %v1491, %v1494
    %v1498 = vld [vmem:[%s7] sm:$0xf]
    %v1499 = vld [vmem:[%s7 + $0x4] sm:$0xf]
    %v1500 = vld [vmem:[%s7 + $0x8] sm:$0xf]
    %v1501 = vld [vmem:[%s7 + $0xc] sm:$0xf]
    %v1502 = vpack.c.bf16 %v1497, %v1497
    %v1503 = vperm.slane %v36, 2
    %v1508 = vunpack.c.l.b16 %v1498
    %v1509 = vunpack.c.l.b16 %v1499
    %v1510 = vunpack.c.l.b16 %v1500
    %v1511 = vunpack.c.l.b16 %v1501
    %v1512 = vpack.c.b16 %v1509, %v1508
    %v1513 = vpack.c.b16 %v1511, %v1510
    %v1517 = vsel %vm39, %v1502, 0
    %1519 = vmatpush.bf16.msra.mxu0 0
    %1520 = vmatpush.bf16.msra.mxu0 0
    %1521 = vmatpush.bf16.msra.mxu0 0
    %1522 = vmatpush.bf16.msra.mxu0 0
    %1523 = vmatpush.bf16.msra.mxu0 0
    %1524 = vmatpush.bf16.msra.mxu0 0
    %1525 = vmatpush.bf16.msra.mxu0 %v1513
    %1526 = vmatpush.bf16.msra.mxu0 %v1512
    %1527 = vmatmul.bf16.gmra.mxu0 %v1517
    %v1528 = vpop.f32.mrf.mxu0
    %v1529 = vadd.f32 %v1503, %v1528
    %v1530 = vpop.f32.mrf.mxu0
    %1531 = vdwg.mxu0
    %v1532 = vtanh.pop %v1529
    %v1533 = vpack.c.bf16 %v1532, %v1532
    %v1534 = vperm.slane %v36, 3
    %1535 = vrot.lane.b32.xlu0 %v1512, 96
    %v1536 = vpop.permute.xlu0 %1535
    %1537 = vrot.lane.b32.xlu0 %v1513, 96
    %v1538 = vpop.permute.xlu0 %1537
    %v1542 = vsel %vm39, %v1533, 0
    %1544 = vmatpush.bf16.msra.mxu0 0
    %1545 = vmatpush.bf16.msra.mxu0 0
    %1546 = vmatpush.bf16.msra.mxu0 0
    %1547 = vmatpush.bf16.msra.mxu0 0
    %1548 = vmatpush.bf16.msra.mxu0 0
    %1549 = vmatpush.bf16.msra.mxu0 0
    %1550 = vmatpush.bf16.msra.mxu0 %v1538
    %1551 = vmatpush.bf16.msra.mxu0 %v1536
    %1552 = vmatmul.bf16.gmra.mxu0 %v1542
    %v1553 = vpop.f32.mrf.mxu0
    %v1554 = vadd.f32 %v1534, %v1553
    %v1555 = vpop.f32.mrf.mxu0
    %1556 = vdwg.mxu0
    %v1557 = vmul.f32 %v1554, 0.5
    %v1558 = vmul.f32 %v1554, 0.70710677
    %vm1559 = vcmp.ge.f32.partialorder %v1558, 0.0
    %v1560 = vsel %vm1559, 1.0, -1.0
    %v1561 = vand.u32 2147483647, %v1558
    %v1562 = vmul.f32 %v1561, 0.3275911
    %v1563 = vadd.f32 %v1562, 1.0
    %v1564 = vrcp.pop %v1563
    %v1565 = vmul.f32 %v1563, %v1564
    %v1566 = vsub.f32 1.0, %v1565
    %v1567 = vmul.f32 %v1564, %v1566
    %v1568 = vadd.f32 %v1564, %v1567
    %vm1569 = vweird.f32 %v1563
    %vm1570 = vweird.f32 %v1564
    %vm1571 = vmor %vm1569, %vm1570
    %v1572 = vsel %vm1571, %v1564, %v1568
    %v1573 = vand.u32 2147483647, %v1563
    %vm1574 = vcmp.eq.f32.partialorder %v1573, 8.507059e+37
    %v1575 = vand.u32 %v1563, 2147483648
    %v1576 = vor.u32 1.1754944e-38, %v1575
    %v1577 = vsel %vm1574, %v1576, %v1572
    %v1578 = vmul.f32 1.0, %v1577
    %v1579 = vmul.f32 %v1578, 1.0614054
    %v1580 = vadd.f32 %v1579, -1.4531521
    %v1581 = vmul.f32 %v1580, %v1578
    %v1582 = vadd.f32 %v1581, 1.4214138
    %v1583 = vmul.f32 %v1582, %v1578
    %v1584 = vadd.f32 %v1583, -0.28449672
    %v1585 = vmul.f32 %v1584, %v1578
    %v1586 = vadd.f32 %v1585, 0.2548296
    %v1587 = vmul.f32 %v1586, %v1578
    %v1588 = vsub.f32 0.0, %v1561
    %v1589 = vmul.f32 %v1588, %v1561
    %v1590 = vmul.f32 %v1589, 1.442695
    %v1591 = vpow.pop %v1590
    %v1592 = vmul.f32 %v1587, %v1591
    %v1593 = vsub.f32 1.0, %v1592
    %v1594 = vmul.f32 %v1560, %v1593
    %v1595 = vadd.f32 %v1594, 1.0
    %v1596 = vmul.f32 %v1557, %v1595
    %v1597 = vpack.c.bf16 %v1596, %v1596
    %v1598 = vperm.slane %v36, 4
    %1599 = vrot.lane.b32.xlu0 %v1512, 80
    %v1600 = vpop.permute.xlu0 %1599
    %v1603 = vsel %vm201, %v1597, 0
    %1605 = vmatpush.bf16.msra.mxu0 0
    %1606 = vmatpush.bf16.msra.mxu0 0
    %1607 = vmatpush.bf16.msra.mxu0 0
    %1608 = vmatpush.bf16.msra.mxu0 0
    %1609 = vmatpush.bf16.msra.mxu0 0
    %1610 = vmatpush.bf16.msra.mxu0 0
    %1611 = vmatpush.bf16.msra.mxu0 0
    %1612 = vmatpush.bf16.msra.mxu0 %v1600
    %1613 = vmatmul.bf16.gmra.mxu0 %v1603
    %v1614 = vpop.f32.mrf.mxu0
    %v1615 = vadd.f32 %v1598, %v1614
    %v1616 = vpop.f32.mrf.mxu0
    %1617 = vdwg.mxu0
    %v1618 = vmul.f32 %v1615, %v1615
    %vm1619 = vcmask 123904
    %v1620 = vsel %vm1619, %v1618, 0.0
    %1621 = vadd.xlane.f32.xlu0 %v1620
    %v1622 = vpop.xlane.xlu0 %1621
    %v1623 = vrsqrt.pop %v1622
    %v1624 = vmul.f32 %v1623, %v1622
    %v1625 = vmul.f32 %v1624, %v1623
    %v1626 = vmul.f32 0.5, %v1625
    %v1627 = vsub.f32 1.5, %v1626
    %v1628 = vmul.f32 %v1623, %v1627
    %v1629 = vmul.f32 %v1622, %v1628
    %vm1630 = vcmp.eq.f32.partialorder %v1622, inf
    %v1631 = vsel %vm1630, %v1622, %v1629
    %vm1632 = vcmp.eq.f32.partialorder %v1622, 0.0
    %v1633 = vand.u32 %v1622, 2147483648
    %v1634 = vsel %vm1632, %v1633, %v1631
    %v1635 = vmax.f32 %v1634, 1e-12
    %v1636 = vrcp.pop %v1635
    %v1637 = vmul.f32 %v1635, %v1636
    %v1638 = vsub.f32 1.0, %v1637
    %v1639 = vmul.f32 %v1636, %v1638
    %v1640 = vadd.f32 %v1636, %v1639
    %vm1641 = vweird.f32 %v1635
    %vm1642 = vweird.f32 %v1636
    %vm1643 = vmor %vm1641, %vm1642
    %v1644 = vsel %vm1643, %v1636, %v1640
    %v1645 = vand.u32 2147483647, %v1635
    %vm1646 = vcmp.eq.f32.partialorder %v1645, 8.507059e+37
    %v1647 = vand.u32 %v1635, 2147483648
    %v1648 = vor.u32 1.1754944e-38, %v1647
    %v1649 = vsel %vm1646, %v1648, %v1644
    %v1650 = vmul.f32 %v1615, %v1649
    %1651 = vst.msk [vmem:[#allocation2] sm:$0x3] %vm1619, %v1650
    // Predicated region
    $region38: #{path_bert_forward.1} parent=1 // pred_check
      _
    $region39: #{path_bert_forward.1} parent=1 // pred_check_branch
      %1653 = sbr.rel (0) target = $region41
    $region40: #{path_bert_forward.1} parent=1 // pred_region
      %1655 = vsyncadd [#allocation3], 0
      %s1657 = sshll.u32 [#allocation2], 4
      %s1658 = int_to_ptr.vmem [resolvable:$true] %s1657
      %s1659 = sshll.u32 %s9, 4
      %s1660 = int_to_ptr.hbm [resolvable:$true] %s1659
      %1662 = dma.vmem_to_hbm [thread:$0]  %s1658, 32, %s1660, [#allocation3]
    $region41: #{path_bert_forward.1} parent=1 // pred_fallthru
      _
    // Predicated region
    $region42: #{path_bert_forward.1} parent=1 // pred_check
      _
    $region43: #{path_bert_forward.1} parent=1 // pred_check_branch
      %1664 = sbr.rel (0) target = $region45
    $region44: #{path_bert_forward.1} parent=1 // pred_region
      %1666 = dma.done [#allocation3], 32
    $region45: #{path_bert_forward.1} parent=1 // pred_fallthru
      _
    %1667 = vsyncpa [#allocation3], 1

</llo_original>
